<compile_context>
chip_gen: v5e
topology: v5e:2x2
jax: 0.10.0
libtpu: 0.0.40
codegen_flags: <defaults>
</compile_context>

<pallas_src>
import functools

import jax
import jax.numpy as jnp
from jax.experimental import pallas as pl
from jax.experimental.pallas import tpu as pltpu

LN_EPS = 1e-5  # PyTorch nn.LayerNorm default


def _layer_norm(x, gamma, beta):
    mu = jnp.mean(x, axis=-1, keepdims=True)
    var = jnp.mean((x - mu) ** 2, axis=-1, keepdims=True)
    return (x - mu) * jax.lax.rsqrt(var + LN_EPS) * gamma + beta


def _gelu_erf(x):
    # Exact-erf GELU via the Abramowitz & Stegun 7.1.26 polynomial
    # (|erf error| < 1.5e-7); uses only exp / mul / add / where so it lowers
    # cleanly in Mosaic (no dependence on an erf primitive lowering).
    z = x * 0.7071067811865476
    az = jnp.abs(z)
    t = 1.0 / (1.0 + 0.3275911 * az)
    poly = t * (0.254829592 + t * (-0.284496736 + t * (1.421413741
               + t * (-1.453152027 + t * 1.061405429))))
    erf_abs = 1.0 - poly * jnp.exp(-az * az)
    erf = jnp.where(z < 0.0, -erf_abs, erf_abs)
    return 0.5 * x * (1.0 + erf)


# ----------------------------------------------------------------------------
# Fused transformer kernel: all `depth` layers in a single pallas_call.
# grid = (B, depth); per-batch tokens are carried layer-to-layer in the
# VMEM-resident output block (constant out index_map along the depth axis).
# ----------------------------------------------------------------------------
def fused_transformer_kernel(
    x_ref,                       # (S, D) f32: initial tokens for this batch
    ln1_g, ln1_b,                # (1, D) f32
    wq, wk, wv,                  # (D, inner) bf16; wq pre-scaled by dh**-0.5
    wo, bo,                      # (inner, D) bf16, (1, D) f32
    ln2_g, ln2_b,                # (1, D) f32
    w1, b1, w2, b2,              # (D, mlp) bf16, (1, mlp) f32, (mlp, D) bf16, (1, D) f32
    o_ref,                       # (S, D) f32: layer-to-layer carry & output
    *, heads, dim_head,
):
    layer = pl.program_id(1)

    @pl.when(layer == 0)
    def _():
        o_ref[...] = x_ref[...]

    x = o_ref[...]                                            # (S, D) f32

    # ---- attention branch (pre-norm) ----
    xn = _layer_norm(x, ln1_g[...], ln1_b[...])
    xn_b = xn.astype(jnp.bfloat16)
    q = jnp.dot(xn_b, wq[...], preferred_element_type=jnp.float32)  # scaled q
    k = jnp.dot(xn_b, wk[...], preferred_element_type=jnp.float32)
    v = jnp.dot(xn_b, wv[...], preferred_element_type=jnp.float32)
    qb = q.astype(jnp.bfloat16)
    kb = k.astype(jnp.bfloat16)
    vb = v.astype(jnp.bfloat16)

    wo_v = wo[...]                                            # (inner, D) bf16
    acc = None
    for h in range(heads):                                    # static loop
        c0 = h * dim_head
        qh = qb[:, c0:c0 + dim_head]
        kh = kb[:, c0:c0 + dim_head]
        vh = vb[:, c0:c0 + dim_head]
        dots = jax.lax.dot_general(                           # (S, S) f32
            qh, kh, (((1,), (1,)), ((), ())),
            preferred_element_type=jnp.float32)
        dots = dots - jnp.max(dots, axis=-1, keepdims=True)
        p = jnp.exp(dots)
        attn = p * pl.reciprocal(jnp.sum(p, axis=-1, keepdims=True),
                                 approx=True)
        oh = jnp.dot(attn.astype(jnp.bfloat16), vh,
                     preferred_element_type=jnp.float32)      # (S, dh)
        # fold the output projection into the head loop (no concatenate)
        contrib = jnp.dot(oh.astype(jnp.bfloat16), wo_v[c0:c0 + dim_head, :],
                          preferred_element_type=jnp.float32)  # (S, D)
        acc = contrib if acc is None else acc + contrib
    x = x + acc + bo[...]                                     # residual

    # ---- feed-forward branch (pre-norm) ----
    xn2 = _layer_norm(x, ln2_g[...], ln2_b[...])
    h1 = jnp.dot(xn2.astype(jnp.bfloat16), w1[...],
                 preferred_element_type=jnp.float32) + b1[...]
    h1 = _gelu_erf(h1)                                        # exact GELU
    h2 = jnp.dot(h1.astype(jnp.bfloat16), w2[...],
                 preferred_element_type=jnp.float32) + b2[...]
    o_ref[...] = x + h2                                       # carry to next layer


def fused_transformer(tok, stacked, *, depth, heads, dim_head):
    B, S, D = tok.shape
    inner = heads * dim_head
    mlp = stacked['w1'].shape[-1]

    kernel = functools.partial(
        fused_transformer_kernel, heads=heads, dim_head=dim_head)

    def wspec(*shape):
        # Stacked per-layer weight: the leading depth axis is indexed by the
        # layer grid position and squeezed out of the kernel ref.
        return pl.BlockSpec((None,) + shape,
                            lambda b, l: (l,) + (0,) * len(shape))

    tok_spec = pl.BlockSpec((None, S, D), lambda b, l: (b, 0, 0))

    return pl.pallas_call(
        kernel,
        out_shape=jax.ShapeDtypeStruct((B, S, D), jnp.float32),
        grid=(B, depth),
        in_specs=[
            tok_spec,
            wspec(1, D), wspec(1, D),
            wspec(D, inner), wspec(D, inner), wspec(D, inner),
            wspec(inner, D), wspec(1, D),
            wspec(1, D), wspec(1, D),
            wspec(D, mlp), wspec(1, mlp), wspec(mlp, D), wspec(1, D),
        ],
        out_specs=tok_spec,
        compiler_params=pltpu.CompilerParams(
            # batches are independent (megacore / v7x 2xTC); layers sequential
            dimension_semantics=("parallel", "arbitrary"),
            vmem_limit_bytes=48 * 1024 * 1024),
    )(tok,
      stacked['ln1_g'], stacked['ln1_b'],
      stacked['wq'], stacked['wk'], stacked['wv'],
      stacked['wo'], stacked['bo'],
      stacked['ln2_g'], stacked['ln2_b'],
      stacked['w1'], stacked['b1'], stacked['w2'], stacked['b2'])


def stack_layer_params(layers, dim_head):
    """Stack per-layer weights on a leading depth axis; split qkv; fold the
    softmax scale into wq; cast matmul weights to bf16 (MXU-native)."""
    inner = layers[0]['wqkv'].shape[1] // 3
    scale = float(dim_head) ** -0.5

    def stk(name, dtype=jnp.float32):
        return jnp.stack([p[name] for p in layers], axis=0).astype(dtype)

    return {
        'ln1_g': stk('ln1_g'), 'ln1_b': stk('ln1_b'),
        'wq': jnp.stack([p['wqkv'][:, :inner] * scale for p in layers],
                        axis=0).astype(jnp.bfloat16),
        'wk': jnp.stack([p['wqkv'][:, inner:2 * inner] for p in layers],
                        axis=0).astype(jnp.bfloat16),
        'wv': jnp.stack([p['wqkv'][:, 2 * inner:] for p in layers],
                        axis=0).astype(jnp.bfloat16),
        'wo': stk('wo', jnp.bfloat16), 'bo': stk('bo'),
        'ln2_g': stk('ln2_g'), 'ln2_b': stk('ln2_b'),
        'w1': stk('w1', jnp.bfloat16), 'b1': stk('b1'),
        'w2': stk('w2', jnp.bfloat16), 'b2': stk('b2'),
    }


# ----------------------------------------------------------------------------
# Full forward pass (tiny glue in XLA, whole transformer in one Pallas kernel)
# ----------------------------------------------------------------------------
def spectralformer_forward(x, params, heads, dim_head):
    B, n, P = x.shape
    D = params['pos_emb'].shape[-1]
    S = n + 1
    depth = len(params['layers'])

    # patch_to_embedding + cls token + positional embedding: tiny ops, left to
    # plain XLA (a dedicated kernel here would be pure dispatch overhead).
    emb = (x.reshape(B * n, P) @ params['patch_w'] + params['patch_b'])
    emb = emb.reshape(B, n, D)
    cls = jnp.broadcast_to(params['cls_token'], (B, 1, D))
    tok = jnp.concatenate([cls, emb], axis=1) + params['pos_emb'][:, :S]
    # dropout(p=0.0) -> identity

    # entire transformer: one fused Pallas kernel, grid = (batch, depth)
    stacked = stack_layer_params(params['layers'], dim_head)
    tok = fused_transformer(tok, stacked,
                            depth=depth, heads=heads, dim_head=dim_head)

    # mlp_head on the cls token (tiny LayerNorm + Linear, left to plain XLA)
    cls_out = tok[:, 0]
    xn = _layer_norm(cls_out, params['head_g'][0], params['head_b'][0])
    return xn @ params['head_w'] + params['head_bias'][0]


# ----------------------------------------------------------------------------
# Pure-JAX f32 reference (for numerical verification)
# ----------------------------------------------------------------------------
def reference_forward(x, params, heads, dim_head):
    B, n, P = x.shape
    D = params['pos_emb'].shape[-1]
    inner = heads * dim_head
    scale = float(dim_head) ** -0.5

    emb = x.reshape(B * n, P) @ params['patch_w'] + params['patch_b']
    emb = emb.reshape(B, n, D)
    cls = jnp.broadcast_to(params['cls_token'], (B, 1, D))
    tok = jnp.concatenate([cls, emb], axis=1) + params['pos_emb'][:, :n + 1]

    for p in params['layers']:
        xn = _layer_norm(tok, p['ln1_g'][0], p['ln1_b'][0])
        qkv = xn @ p['wqkv']
        q, k, v = jnp.split(qkv, 3, axis=-1)
        S = tok.shape[1]
        q = q.reshape(B, S, heads, dim_head).transpose(0, 2, 1, 3)
        k = k.reshape(B, S, heads, dim_head).transpose(0, 2, 1, 3)
        v = v.reshape(B, S, heads, dim_head).transpose(0, 2, 1, 3)
        dots = jnp.einsum('bhid,bhjd->bhij', q, k) * scale
        attn = jax.nn.softmax(dots, axis=-1)
        out = jnp.einsum('bhij,bhjd->bhid', attn, v)
        out = out.transpose(0, 2, 1, 3).reshape(B, S, inner)
        tok = tok + (out @ p['wo'] + p['bo'][0])

        xn2 = _layer_norm(tok, p['ln2_g'][0], p['ln2_b'][0])
        h1 = jax.nn.gelu(xn2 @ p['w1'] + p['b1'][0], approximate=False)
        tok = tok + (h1 @ p['w2'] + p['b2'][0])

    cls_out = tok[:, 0]
    xn = _layer_norm(cls_out, params['head_g'][0], params['head_b'][0])
    return xn @ params['head_w'] + params['head_bias'][0]


# ----------------------------------------------------------------------------
# Deterministic parameter init (shapes follow the PyTorch __init__)
# ----------------------------------------------------------------------------
def init_params(key, patch_dim, input_dim, dim, depth, heads, dim_head,
                mlp_dim, num_classes):
    inner = heads * dim_head
    keys = jax.random.split(key, 8 + depth)

    def normal(k, shape, s=0.05):
        return s * jax.random.normal(k, shape, jnp.float32)

    params = {
        'patch_w': normal(keys[0], (patch_dim, dim)),
        'patch_b': normal(keys[1], (dim,)),
        'cls_token': normal(keys[2], (1, 1, dim)),
        'pos_emb': normal(keys[3], (1, input_dim + 1, dim)),
        'head_g': jnp.ones((1, dim), jnp.float32),
        'head_b': jnp.zeros((1, dim), jnp.float32),
        'head_w': normal(keys[4], (dim, num_classes)),
        'head_bias': normal(keys[5], (1, num_classes)),
        'layers': [],
    }
    for l in range(depth):
        lk = jax.random.split(keys[8 + l], 6)
        params['layers'].append({
            'ln1_g': jnp.ones((1, dim), jnp.float32),
            'ln1_b': jnp.zeros((1, dim), jnp.float32),
            'wqkv': normal(lk[0], (dim, 3 * inner)),
            'wo': normal(lk[1], (inner, dim)),
            'bo': normal(lk[2], (1, dim)),
            'ln2_g': jnp.ones((1, dim), jnp.float32),
            'ln2_b': jnp.zeros((1, dim), jnp.float32),
            'w1': normal(lk[3], (dim, mlp_dim)),
            'b1': normal(lk[4], (1, mlp_dim)),
            'w2': normal(lk[5], (mlp_dim, dim)),
            'b2': jnp.zeros((1, dim), jnp.float32),
        })
    return params


if __name__ == "__main__":
    # Small SpectralFormer config (mode='ViT', dropout=0.0)
    batch = 2
    input_dim = 8          # number of spectral tokens (n)
    image_size = 2
    near_band = 3
    patch_dim = image_size ** 2 * near_band   # 12
    dim = 32
    depth = 2
    heads = 4
    dim_head = 16
    mlp_dim = 32
    num_classes = 5

    root = jax.random.PRNGKey(0)
    kx, kp = jax.random.split(root)
    x = jax.random.normal(kx, (batch, input_dim, patch_dim), jnp.float32)
    params = init_params(kp, patch_dim, input_dim, dim, depth, heads,
                         dim_head, mlp_dim, num_classes)

    fwd = jax.jit(spectralformer_forward, static_argnums=(2, 3))
    logits = jax.block_until_ready(fwd(x, params, heads, dim_head))

    ref = jax.block_until_ready(reference_forward(x, params, heads, dim_head))
    assert logits.shape == (batch, num_classes)
    # bf16 MXU operands + approx reciprocal introduce ~1e-3 abs error vs f32 ref
    assert jnp.allclose(logits, ref, atol=2e-2, rtol=2e-2), (
        f"mismatch: max abs err {jnp.max(jnp.abs(logits - ref))}")

    print("KERNEL_OK")
</pallas_src>

<mosaic_0001>
module attributes {stable_mosaic.version = 11 : i64} {
  func.func @fused_transformer_kernel(%arg0: i32, %arg1: i32, %arg2: memref<1x9x32xf32, #tpu.memory_space<vmem>>, %arg3: memref<1x1x32xf32, #tpu.memory_space<vmem>>, %arg4: memref<1x1x32xf32, #tpu.memory_space<vmem>>, %arg5: memref<1x32x64xbf16, #tpu.memory_space<vmem>>, %arg6: memref<1x32x64xbf16, #tpu.memory_space<vmem>>, %arg7: memref<1x32x64xbf16, #tpu.memory_space<vmem>>, %arg8: memref<1x64x32xbf16, #tpu.memory_space<vmem>>, %arg9: memref<1x1x32xf32, #tpu.memory_space<vmem>>, %arg10: memref<1x1x32xf32, #tpu.memory_space<vmem>>, %arg11: memref<1x1x32xf32, #tpu.memory_space<vmem>>, %arg12: memref<1x32x32xbf16, #tpu.memory_space<vmem>>, %arg13: memref<1x1x32xf32, #tpu.memory_space<vmem>>, %arg14: memref<1x32x32xbf16, #tpu.memory_space<vmem>>, %arg15: memref<1x1x32xf32, #tpu.memory_space<vmem>>, %arg16: memref<1x9x32xf32, #tpu.memory_space<vmem>>) attributes {dimension_semantics = [#tpu.dimension_semantics<parallel>, #tpu.dimension_semantics<arbitrary>], iteration_bounds = array<i64: 2, 2>, scalar_prefetch = 0 : i64, scratch_operands = 0 : i64, tpu.core_type = #tpu.core_type<tc>, window_params = [{transform_indices = @transform_0, window_bounds = array<i64: 1, 9, 32>}, {transform_indices = @transform_1, window_bounds = array<i64: 1, 1, 32>}, {transform_indices = @transform_2, window_bounds = array<i64: 1, 1, 32>}, {transform_indices = @transform_3, window_bounds = array<i64: 1, 32, 64>}, {transform_indices = @transform_4, window_bounds = array<i64: 1, 32, 64>}, {transform_indices = @transform_5, window_bounds = array<i64: 1, 32, 64>}, {transform_indices = @transform_6, window_bounds = array<i64: 1, 64, 32>}, {transform_indices = @transform_7, window_bounds = array<i64: 1, 1, 32>}, {transform_indices = @transform_8, window_bounds = array<i64: 1, 1, 32>}, {transform_indices = @transform_9, window_bounds = array<i64: 1, 1, 32>}, {transform_indices = @transform_10, window_bounds = array<i64: 1, 32, 32>}, {transform_indices = @transform_11, window_bounds = array<i64: 1, 1, 32>}, {transform_indices = @transform_12, window_bounds = array<i64: 1, 32, 32>}, {transform_indices = @transform_13, window_bounds = array<i64: 1, 1, 32>}, {transform_indices = @transform_14, window_bounds = array<i64: 1, 9, 32>}]} {
    %c0_i32 = arith.constant 0 : i32
    %0 = arith.cmpi eq, %arg1, %c0_i32 : i32
    %1 = arith.extui %0 : i1 to i32
    %c0_i32_0 = arith.constant 0 : i32
    %2 = arith.cmpi ne, %1, %c0_i32_0 : i32
    scf.if %2 {
      %c0_94 = arith.constant 0 : index
      %c0_95 = arith.constant 0 : index
      %c0_96 = arith.constant 0 : index
      %216 = vector.load %arg2[%c0_94, %c0_95, %c0_96] : memref<1x9x32xf32, #tpu.memory_space<vmem>>, vector<1x9x32xf32>
      %217 = vector.shape_cast %216 : vector<1x9x32xf32> to vector<9x32xf32>
      %c0_97 = arith.constant 0 : index
      %c0_98 = arith.constant 0 : index
      %c0_99 = arith.constant 0 : index
      %218 = vector.load %arg16[%c0_97, %c0_98, %c0_99] : memref<1x9x32xf32, #tpu.memory_space<vmem>>, vector<1x9x32xf32>
      %219 = vector.shape_cast %218 : vector<1x9x32xf32> to vector<9x32xf32>
      %220 = vector.shape_cast %217 : vector<9x32xf32> to vector<1x9x32xf32>
      tpu.vector_store %arg16[%c0_97, %c0_98, %c0_99], %220 {strides = array<i32>} : memref<1x9x32xf32, #tpu.memory_space<vmem>>, vector<1x9x32xf32>,
    } else {
    }
    %c0 = arith.constant 0 : index
    %c0_1 = arith.constant 0 : index
    %c0_2 = arith.constant 0 : index
    %3 = vector.load %arg16[%c0, %c0_1, %c0_2] : memref<1x9x32xf32, #tpu.memory_space<vmem>>, vector<1x9x32xf32>
    %4 = vector.shape_cast %3 : vector<1x9x32xf32> to vector<9x32xf32>
    %c0_3 = arith.constant 0 : index
    %c0_4 = arith.constant 0 : index
    %c0_5 = arith.constant 0 : index
    %5 = vector.load %arg3[%c0_3, %c0_4, %c0_5] : memref<1x1x32xf32, #tpu.memory_space<vmem>>, vector<1x1x32xf32>
    %6 = vector.shape_cast %5 : vector<1x1x32xf32> to vector<1x32xf32>
    %c0_6 = arith.constant 0 : index
    %c0_7 = arith.constant 0 : index
    %c0_8 = arith.constant 0 : index
    %7 = vector.load %arg4[%c0_6, %c0_7, %c0_8] : memref<1x1x32xf32, #tpu.memory_space<vmem>>, vector<1x1x32xf32>
    %8 = vector.shape_cast %7 : vector<1x1x32xf32> to vector<1x32xf32>
    %cst = arith.constant dense<0.000000e+00> : vector<9xf32>
    %9 = vector.multi_reduction <add>, %4, %cst [1] : vector<9x32xf32> to vector<9xf32>
    %10 = vector.shape_cast %9 : vector<9xf32> to vector<9x1xf32>
    %cst_9 = arith.constant 3.200000e+01 : f32
    %11 = vector.broadcast %cst_9 : f32 to vector<9x1xf32>
    %12 = arith.divf %10, %11 : vector<9x1xf32>
    %13 = vector.broadcast %12 : vector<9x1xf32> to vector<9x32xf32>
    %14 = arith.subf %4, %13 : vector<9x32xf32>
    %15 = arith.mulf %14, %14 : vector<9x32xf32>
    %cst_10 = arith.constant dense<0.000000e+00> : vector<9xf32>
    %16 = vector.multi_reduction <add>, %15, %cst_10 [1] : vector<9x32xf32> to vector<9xf32>
    %17 = vector.shape_cast %16 : vector<9xf32> to vector<9x1xf32>
    %cst_11 = arith.constant 3.200000e+01 : f32
    %18 = vector.broadcast %cst_11 : f32 to vector<9x1xf32>
    %19 = arith.divf %17, %18 : vector<9x1xf32>
    %20 = vector.broadcast %12 : vector<9x1xf32> to vector<9x32xf32>
    %21 = arith.subf %4, %20 : vector<9x32xf32>
    %cst_12 = arith.constant 9.99999974E-6 : f32
    %22 = vector.broadcast %cst_12 : f32 to vector<9x1xf32>
    %23 = arith.addf %19, %22 : vector<9x1xf32>
    %24 = math.rsqrt %23 : vector<9x1xf32>
    %25 = vector.broadcast %24 : vector<9x1xf32> to vector<9x32xf32>
    %26 = arith.mulf %21, %25 : vector<9x32xf32>
    %27 = vector.broadcast %6 : vector<1x32xf32> to vector<9x32xf32>
    %28 = arith.mulf %26, %27 : vector<9x32xf32>
    %29 = vector.broadcast %8 : vector<1x32xf32> to vector<9x32xf32>
    %30 = arith.addf %28, %29 : vector<9x32xf32>
    %31 = arith.truncf %30 : vector<9x32xf32> to vector<9x32xbf16>
    %c0_13 = arith.constant 0 : index
    %c0_14 = arith.constant 0 : index
    %c0_15 = arith.constant 0 : index
    %32 = vector.load %arg5[%c0_13, %c0_14, %c0_15] : memref<1x32x64xbf16, #tpu.memory_space<vmem>>, vector<1x32x64xbf16>
    %33 = vector.shape_cast %32 : vector<1x32x64xbf16> to vector<32x64xbf16>
    %cst_16 = arith.constant dense<0.000000e+00> : vector<9x64xf32>
    %34 = tpu.matmul %31, %33, %cst_16 {dimension_numbers = #tpu.dot_dimension_numbers<[1], [0], [0], [1], [0, 0, 1, 1], [], []>} : vector<9x32xbf16>, vector<32x64xbf16>, vector<9x64xf32> -> vector<9x64xf32>
    %c0_17 = arith.constant 0 : index
    %c0_18 = arith.constant 0 : index
    %c0_19 = arith.constant 0 : index
    %35 = vector.load %arg6[%c0_17, %c0_18, %c0_19] : memref<1x32x64xbf16, #tpu.memory_space<vmem>>, vector<1x32x64xbf16>
    %36 = vector.shape_cast %35 : vector<1x32x64xbf16> to vector<32x64xbf16>
    %cst_20 = arith.constant dense<0.000000e+00> : vector<9x64xf32>
    %37 = tpu.matmul %31, %36, %cst_20 {dimension_numbers = #tpu.dot_dimension_numbers<[1], [0], [0], [1], [0, 0, 1, 1], [], []>} : vector<9x32xbf16>, vector<32x64xbf16>, vector<9x64xf32> -> vector<9x64xf32>
    %c0_21 = arith.constant 0 : index
    %c0_22 = arith.constant 0 : index
    %c0_23 = arith.constant 0 : index
    %38 = vector.load %arg7[%c0_21, %c0_22, %c0_23] : memref<1x32x64xbf16, #tpu.memory_space<vmem>>, vector<1x32x64xbf16>
    %39 = vector.shape_cast %38 : vector<1x32x64xbf16> to vector<32x64xbf16>
    %cst_24 = arith.constant dense<0.000000e+00> : vector<9x64xf32>
    %40 = tpu.matmul %31, %39, %cst_24 {dimension_numbers = #tpu.dot_dimension_numbers<[1], [0], [0], [1], [0, 0, 1, 1], [], []>} : vector<9x32xbf16>, vector<32x64xbf16>, vector<9x64xf32> -> vector<9x64xf32>
    %41 = arith.truncf %34 : vector<9x64xf32> to vector<9x64xbf16>
    %42 = arith.truncf %37 : vector<9x64xf32> to vector<9x64xbf16>
    %43 = arith.truncf %40 : vector<9x64xf32> to vector<9x64xbf16>
    %c0_25 = arith.constant 0 : index
    %c0_26 = arith.constant 0 : index
    %c0_27 = arith.constant 0 : index
    %44 = vector.load %arg8[%c0_25, %c0_26, %c0_27] : memref<1x64x32xbf16, #tpu.memory_space<vmem>>, vector<1x64x32xbf16>
    %45 = vector.shape_cast %44 : vector<1x64x32xbf16> to vector<64x32xbf16>
    %46 = vector.extract_strided_slice %41 {offsets = [0, 0], sizes = [9, 16], strides = [1, 1]} : vector<9x64xbf16> to vector<9x16xbf16>
    %47 = vector.extract_strided_slice %42 {offsets = [0, 0], sizes = [9, 16], strides = [1, 1]} : vector<9x64xbf16> to vector<9x16xbf16>
    %48 = vector.extract_strided_slice %43 {offsets = [0, 0], sizes = [9, 16], strides = [1, 1]} : vector<9x64xbf16> to vector<9x16xbf16>
    %cst_28 = arith.constant dense<0.000000e+00> : vector<9x9xf32>
    %49 = tpu.matmul %46, %47, %cst_28 {dimension_numbers = #tpu.dot_dimension_numbers<[1], [1], [0], [0], [0, 0, 1, 0], [], []>} : vector<9x16xbf16>, vector<9x16xbf16>, vector<9x9xf32> -> vector<9x9xf32>
    %cst_29 = arith.constant dense<0xFF800000> : vector<9xf32>
    %50 = vector.multi_reduction <maximumf>, %49, %cst_29 [1] : vector<9x9xf32> to vector<9xf32>
    %51 = vector.shape_cast %50 : vector<9xf32> to vector<9x1xf32>
    %52 = vector.broadcast %51 : vector<9x1xf32> to vector<9x9xf32>
    %53 = arith.subf %49, %52 : vector<9x9xf32>
    %54 = math.exp %53 : vector<9x9xf32>
    %cst_30 = arith.constant dense<0.000000e+00> : vector<9xf32>
    %55 = vector.multi_reduction <add>, %54, %cst_30 [1] : vector<9x9xf32> to vector<9xf32>
    %56 = vector.shape_cast %55 : vector<9xf32> to vector<9x1xf32>
    %57 = tpu.reciprocal %56 {approx = true} : vector<9x1xf32> -> vector<9x1xf32>
    %58 = vector.broadcast %57 : vector<9x1xf32> to vector<9x9xf32>
    %59 = arith.mulf %54, %58 : vector<9x9xf32>
    %60 = arith.truncf %59 : vector<9x9xf32> to vector<9x9xbf16>
    %cst_31 = arith.constant dense<0.000000e+00> : vector<9x16xf32>
    %61 = tpu.matmul %60, %48, %cst_31 {dimension_numbers = #tpu.dot_dimension_numbers<[1], [0], [0], [1], [0, 0, 1, 1], [], []>} : vector<9x9xbf16>, vector<9x16xbf16>, vector<9x16xf32> -> vector<9x16xf32>
    %62 = arith.truncf %61 : vector<9x16xf32> to vector<9x16xbf16>
    %63 = vector.extract_strided_slice %45 {offsets = [0, 0], sizes = [16, 32], strides = [1, 1]} : vector<64x32xbf16> to vector<16x32xbf16>
    %cst_32 = arith.constant dense<0.000000e+00> : vector<9x32xf32>
    %64 = tpu.matmul %62, %63, %cst_32 {dimension_numbers = #tpu.dot_dimension_numbers<[1], [0], [0], [1], [0, 0, 1, 1], [], []>} : vector<9x16xbf16>, vector<16x32xbf16>, vector<9x32xf32> -> vector<9x32xf32>
    %65 = vector.extract_strided_slice %41 {offsets = [0, 16], sizes = [9, 16], strides = [1, 1]} : vector<9x64xbf16> to vector<9x16xbf16>
    %66 = vector.extract_strided_slice %42 {offsets = [0, 16], sizes = [9, 16], strides = [1, 1]} : vector<9x64xbf16> to vector<9x16xbf16>
    %67 = vector.extract_strided_slice %43 {offsets = [0, 16], sizes = [9, 16], strides = [1, 1]} : vector<9x64xbf16> to vector<9x16xbf16>
    %cst_33 = arith.constant dense<0.000000e+00> : vector<9x9xf32>
    %68 = tpu.matmul %65, %66, %cst_33 {dimension_numbers = #tpu.dot_dimension_numbers<[1], [1], [0], [0], [0, 0, 1, 0], [], []>} : vector<9x16xbf16>, vector<9x16xbf16>, vector<9x9xf32> -> vector<9x9xf32>
    %cst_34 = arith.constant dense<0xFF800000> : vector<9xf32>
    %69 = vector.multi_reduction <maximumf>, %68, %cst_34 [1] : vector<9x9xf32> to vector<9xf32>
    %70 = vector.shape_cast %69 : vector<9xf32> to vector<9x1xf32>
    %71 = vector.broadcast %70 : vector<9x1xf32> to vector<9x9xf32>
    %72 = arith.subf %68, %71 : vector<9x9xf32>
    %73 = math.exp %72 : vector<9x9xf32>
    %cst_35 = arith.constant dense<0.000000e+00> : vector<9xf32>
    %74 = vector.multi_reduction <add>, %73, %cst_35 [1] : vector<9x9xf32> to vector<9xf32>
    %75 = vector.shape_cast %74 : vector<9xf32> to vector<9x1xf32>
    %76 = tpu.reciprocal %75 {approx = true} : vector<9x1xf32> -> vector<9x1xf32>
    %77 = vector.broadcast %76 : vector<9x1xf32> to vector<9x9xf32>
    %78 = arith.mulf %73, %77 : vector<9x9xf32>
    %79 = arith.truncf %78 : vector<9x9xf32> to vector<9x9xbf16>
    %cst_36 = arith.constant dense<0.000000e+00> : vector<9x16xf32>
    %80 = tpu.matmul %79, %67, %cst_36 {dimension_numbers = #tpu.dot_dimension_numbers<[1], [0], [0], [1], [0, 0, 1, 1], [], []>} : vector<9x9xbf16>, vector<9x16xbf16>, vector<9x16xf32> -> vector<9x16xf32>
    %81 = arith.truncf %80 : vector<9x16xf32> to vector<9x16xbf16>
    %82 = vector.extract_strided_slice %45 {offsets = [16, 0], sizes = [16, 32], strides = [1, 1]} : vector<64x32xbf16> to vector<16x32xbf16>
    %cst_37 = arith.constant dense<0.000000e+00> : vector<9x32xf32>
    %83 = tpu.matmul %81, %82, %cst_37 {dimension_numbers = #tpu.dot_dimension_numbers<[1], [0], [0], [1], [0, 0, 1, 1], [], []>} : vector<9x16xbf16>, vector<16x32xbf16>, vector<9x32xf32> -> vector<9x32xf32>
    %84 = arith.addf %64, %83 : vector<9x32xf32>
    %85 = vector.extract_strided_slice %41 {offsets = [0, 32], sizes = [9, 16], strides = [1, 1]} : vector<9x64xbf16> to vector<9x16xbf16>
    %86 = vector.extract_strided_slice %42 {offsets = [0, 32], sizes = [9, 16], strides = [1, 1]} : vector<9x64xbf16> to vector<9x16xbf16>
    %87 = vector.extract_strided_slice %43 {offsets = [0, 32], sizes = [9, 16], strides = [1, 1]} : vector<9x64xbf16> to vector<9x16xbf16>
    %cst_38 = arith.constant dense<0.000000e+00> : vector<9x9xf32>
    %88 = tpu.matmul %85, %86, %cst_38 {dimension_numbers = #tpu.dot_dimension_numbers<[1], [1], [0], [0], [0, 0, 1, 0], [], []>} : vector<9x16xbf16>, vector<9x16xbf16>, vector<9x9xf32> -> vector<9x9xf32>
    %cst_39 = arith.constant dense<0xFF800000> : vector<9xf32>
    %89 = vector.multi_reduction <maximumf>, %88, %cst_39 [1] : vector<9x9xf32> to vector<9xf32>
    %90 = vector.shape_cast %89 : vector<9xf32> to vector<9x1xf32>
    %91 = vector.broadcast %90 : vector<9x1xf32> to vector<9x9xf32>
    %92 = arith.subf %88, %91 : vector<9x9xf32>
    %93 = math.exp %92 : vector<9x9xf32>
    %cst_40 = arith.constant dense<0.000000e+00> : vector<9xf32>
    %94 = vector.multi_reduction <add>, %93, %cst_40 [1] : vector<9x9xf32> to vector<9xf32>
    %95 = vector.shape_cast %94 : vector<9xf32> to vector<9x1xf32>
    %96 = tpu.reciprocal %95 {approx = true} : vector<9x1xf32> -> vector<9x1xf32>
    %97 = vector.broadcast %96 : vector<9x1xf32> to vector<9x9xf32>
    %98 = arith.mulf %93, %97 : vector<9x9xf32>
    %99 = arith.truncf %98 : vector<9x9xf32> to vector<9x9xbf16>
    %cst_41 = arith.constant dense<0.000000e+00> : vector<9x16xf32>
    %100 = tpu.matmul %99, %87, %cst_41 {dimension_numbers = #tpu.dot_dimension_numbers<[1], [0], [0], [1], [0, 0, 1, 1], [], []>} : vector<9x9xbf16>, vector<9x16xbf16>, vector<9x16xf32> -> vector<9x16xf32>
    %101 = arith.truncf %100 : vector<9x16xf32> to vector<9x16xbf16>
    %102 = vector.extract_strided_slice %45 {offsets = [32, 0], sizes = [16, 32], strides = [1, 1]} : vector<64x32xbf16> to vector<16x32xbf16>
    %cst_42 = arith.constant dense<0.000000e+00> : vector<9x32xf32>
    %103 = tpu.matmul %101, %102, %cst_42 {dimension_numbers = #tpu.dot_dimension_numbers<[1], [0], [0], [1], [0, 0, 1, 1], [], []>} : vector<9x16xbf16>, vector<16x32xbf16>, vector<9x32xf32> -> vector<9x32xf32>
    %104 = arith.addf %84, %103 : vector<9x32xf32>
    %105 = vector.extract_strided_slice %41 {offsets = [0, 48], sizes = [9, 16], strides = [1, 1]} : vector<9x64xbf16> to vector<9x16xbf16>
    %106 = vector.extract_strided_slice %42 {offsets = [0, 48], sizes = [9, 16], strides = [1, 1]} : vector<9x64xbf16> to vector<9x16xbf16>
    %107 = vector.extract_strided_slice %43 {offsets = [0, 48], sizes = [9, 16], strides = [1, 1]} : vector<9x64xbf16> to vector<9x16xbf16>
    %cst_43 = arith.constant dense<0.000000e+00> : vector<9x9xf32>
    %108 = tpu.matmul %105, %106, %cst_43 {dimension_numbers = #tpu.dot_dimension_numbers<[1], [1], [0], [0], [0, 0, 1, 0], [], []>} : vector<9x16xbf16>, vector<9x16xbf16>, vector<9x9xf32> -> vector<9x9xf32>
    %cst_44 = arith.constant dense<0xFF800000> : vector<9xf32>
    %109 = vector.multi_reduction <maximumf>, %108, %cst_44 [1] : vector<9x9xf32> to vector<9xf32>
    %110 = vector.shape_cast %109 : vector<9xf32> to vector<9x1xf32>
    %111 = vector.broadcast %110 : vector<9x1xf32> to vector<9x9xf32>
    %112 = arith.subf %108, %111 : vector<9x9xf32>
    %113 = math.exp %112 : vector<9x9xf32>
    %cst_45 = arith.constant dense<0.000000e+00> : vector<9xf32>
    %114 = vector.multi_reduction <add>, %113, %cst_45 [1] : vector<9x9xf32> to vector<9xf32>
    %115 = vector.shape_cast %114 : vector<9xf32> to vector<9x1xf32>
    %116 = tpu.reciprocal %115 {approx = true} : vector<9x1xf32> -> vector<9x1xf32>
    %117 = vector.broadcast %116 : vector<9x1xf32> to vector<9x9xf32>
    %118 = arith.mulf %113, %117 : vector<9x9xf32>
    %119 = arith.truncf %118 : vector<9x9xf32> to vector<9x9xbf16>
    %cst_46 = arith.constant dense<0.000000e+00> : vector<9x16xf32>
    %120 = tpu.matmul %119, %107, %cst_46 {dimension_numbers = #tpu.dot_dimension_numbers<[1], [0], [0], [1], [0, 0, 1, 1], [], []>} : vector<9x9xbf16>, vector<9x16xbf16>, vector<9x16xf32> -> vector<9x16xf32>
    %121 = arith.truncf %120 : vector<9x16xf32> to vector<9x16xbf16>
    %122 = vector.extract_strided_slice %45 {offsets = [48, 0], sizes = [16, 32], strides = [1, 1]} : vector<64x32xbf16> to vector<16x32xbf16>
    %cst_47 = arith.constant dense<0.000000e+00> : vector<9x32xf32>
    %123 = tpu.matmul %121, %122, %cst_47 {dimension_numbers = #tpu.dot_dimension_numbers<[1], [0], [0], [1], [0, 0, 1, 1], [], []>} : vector<9x16xbf16>, vector<16x32xbf16>, vector<9x32xf32> -> vector<9x32xf32>
    %124 = arith.addf %104, %123 : vector<9x32xf32>
    %125 = arith.addf %4, %124 : vector<9x32xf32>
    %c0_48 = arith.constant 0 : index
    %c0_49 = arith.constant 0 : index
    %c0_50 = arith.constant 0 : index
    %126 = vector.load %arg9[%c0_48, %c0_49, %c0_50] : memref<1x1x32xf32, #tpu.memory_space<vmem>>, vector<1x1x32xf32>
    %127 = vector.shape_cast %126 : vector<1x1x32xf32> to vector<1x32xf32>
    %128 = vector.broadcast %127 : vector<1x32xf32> to vector<9x32xf32>
    %129 = arith.addf %125, %128 : vector<9x32xf32>
    %c0_51 = arith.constant 0 : index
    %c0_52 = arith.constant 0 : index
    %c0_53 = arith.constant 0 : index
    %130 = vector.load %arg10[%c0_51, %c0_52, %c0_53] : memref<1x1x32xf32, #tpu.memory_space<vmem>>, vector<1x1x32xf32>
    %131 = vector.shape_cast %130 : vector<1x1x32xf32> to vector<1x32xf32>
    %c0_54 = arith.constant 0 : index
    %c0_55 = arith.constant 0 : index
    %c0_56 = arith.constant 0 : index
    %132 = vector.load %arg11[%c0_54, %c0_55, %c0_56] : memref<1x1x32xf32, #tpu.memory_space<vmem>>, vector<1x1x32xf32>
    %133 = vector.shape_cast %132 : vector<1x1x32xf32> to vector<1x32xf32>
    %cst_57 = arith.constant dense<0.000000e+00> : vector<9xf32>
    %134 = vector.multi_reduction <add>, %129, %cst_57 [1] : vector<9x32xf32> to vector<9xf32>
    %135 = vector.shape_cast %134 : vector<9xf32> to vector<9x1xf32>
    %cst_58 = arith.constant 3.200000e+01 : f32
    %136 = vector.broadcast %cst_58 : f32 to vector<9x1xf32>
    %137 = arith.divf %135, %136 : vector<9x1xf32>
    %138 = vector.broadcast %137 : vector<9x1xf32> to vector<9x32xf32>
    %139 = arith.subf %129, %138 : vector<9x32xf32>
    %140 = arith.mulf %139, %139 : vector<9x32xf32>
    %cst_59 = arith.constant dense<0.000000e+00> : vector<9xf32>
    %141 = vector.multi_reduction <add>, %140, %cst_59 [1] : vector<9x32xf32> to vector<9xf32>
    %142 = vector.shape_cast %141 : vector<9xf32> to vector<9x1xf32>
    %cst_60 = arith.constant 3.200000e+01 : f32
    %143 = vector.broadcast %cst_60 : f32 to vector<9x1xf32>
    %144 = arith.divf %142, %143 : vector<9x1xf32>
    %145 = vector.broadcast %137 : vector<9x1xf32> to vector<9x32xf32>
    %146 = arith.subf %129, %145 : vector<9x32xf32>
    %cst_61 = arith.constant 9.99999974E-6 : f32
    %147 = vector.broadcast %cst_61 : f32 to vector<9x1xf32>
    %148 = arith.addf %144, %147 : vector<9x1xf32>
    %149 = math.rsqrt %148 : vector<9x1xf32>
    %150 = vector.broadcast %149 : vector<9x1xf32> to vector<9x32xf32>
    %151 = arith.mulf %146, %150 : vector<9x32xf32>
    %152 = vector.broadcast %131 : vector<1x32xf32> to vector<9x32xf32>
    %153 = arith.mulf %151, %152 : vector<9x32xf32>
    %154 = vector.broadcast %133 : vector<1x32xf32> to vector<9x32xf32>
    %155 = arith.addf %153, %154 : vector<9x32xf32>
    %156 = arith.truncf %155 : vector<9x32xf32> to vector<9x32xbf16>
    %c0_62 = arith.constant 0 : index
    %c0_63 = arith.constant 0 : index
    %c0_64 = arith.constant 0 : index
    %157 = vector.load %arg12[%c0_62, %c0_63, %c0_64] : memref<1x32x32xbf16, #tpu.memory_space<vmem>>, vector<1x32x32xbf16>
    %158 = vector.shape_cast %157 : vector<1x32x32xbf16> to vector<32x32xbf16>
    %cst_65 = arith.constant dense<0.000000e+00> : vector<9x32xf32>
    %159 = tpu.matmul %156, %158, %cst_65 {dimension_numbers = #tpu.dot_dimension_numbers<[1], [0], [0], [1], [0, 0, 1, 1], [], []>} : vector<9x32xbf16>, vector<32x32xbf16>, vector<9x32xf32> -> vector<9x32xf32>
    %c0_66 = arith.constant 0 : index
    %c0_67 = arith.constant 0 : index
    %c0_68 = arith.constant 0 : index
    %160 = vector.load %arg13[%c0_66, %c0_67, %c0_68] : memref<1x1x32xf32, #tpu.memory_space<vmem>>, vector<1x1x32xf32>
    %161 = vector.shape_cast %160 : vector<1x1x32xf32> to vector<1x32xf32>
    %162 = vector.broadcast %161 : vector<1x32xf32> to vector<9x32xf32>
    %163 = arith.addf %159, %162 : vector<9x32xf32>
    %cst_69 = arith.constant 0.707106769 : f32
    %164 = vector.broadcast %cst_69 : f32 to vector<9x32xf32>
    %165 = arith.mulf %163, %164 : vector<9x32xf32>
    %166 = math.absf %165 : vector<9x32xf32>
    %cst_70 = arith.constant 0.327591091 : f32
    %167 = vector.broadcast %cst_70 : f32 to vector<9x32xf32>
    %168 = arith.mulf %167, %166 : vector<9x32xf32>
    %cst_71 = arith.constant 1.000000e+00 : f32
    %169 = vector.broadcast %cst_71 : f32 to vector<9x32xf32>
    %170 = arith.addf %169, %168 : vector<9x32xf32>
    %cst_72 = arith.constant 1.000000e+00 : f32
    %171 = vector.broadcast %cst_72 : f32 to vector<9x32xf32>
    %172 = arith.divf %171, %170 : vector<9x32xf32>
    %cst_73 = arith.constant 1.06140542 : f32
    %173 = vector.broadcast %cst_73 : f32 to vector<9x32xf32>
    %174 = arith.mulf %172, %173 : vector<9x32xf32>
    %cst_74 = arith.constant -1.45315206 : f32
    %175 = vector.broadcast %cst_74 : f32 to vector<9x32xf32>
    %176 = arith.addf %175, %174 : vector<9x32xf32>
    %177 = arith.mulf %172, %176 : vector<9x32xf32>
    %cst_75 = arith.constant 1.42141378 : f32
    %178 = vector.broadcast %cst_75 : f32 to vector<9x32xf32>
    %179 = arith.addf %178, %177 : vector<9x32xf32>
    %180 = arith.mulf %172, %179 : vector<9x32xf32>
    %cst_76 = arith.constant -0.284496725 : f32
    %181 = vector.broadcast %cst_76 : f32 to vector<9x32xf32>
    %182 = arith.addf %181, %180 : vector<9x32xf32>
    %183 = arith.mulf %172, %182 : vector<9x32xf32>
    %cst_77 = arith.constant 0.254829586 : f32
    %184 = vector.broadcast %cst_77 : f32 to vector<9x32xf32>
    %185 = arith.addf %184, %183 : vector<9x32xf32>
    %186 = arith.mulf %172, %185 : vector<9x32xf32>
    %cst_78 = arith.constant 0.000000e+00 : f32
    %187 = vector.broadcast %cst_78 : f32 to vector<9x32xf32>
    %188 = arith.subf %187, %166 : vector<9x32xf32>
    %189 = arith.mulf %188, %166 : vector<9x32xf32>
    %190 = math.exp %189 : vector<9x32xf32>
    %191 = arith.mulf %186, %190 : vector<9x32xf32>
    %cst_79 = arith.constant 1.000000e+00 : f32
    %192 = vector.broadcast %cst_79 : f32 to vector<9x32xf32>
    %193 = arith.subf %192, %191 : vector<9x32xf32>
    %cst_80 = arith.constant 0.000000e+00 : f32
    %194 = vector.broadcast %cst_80 : f32 to vector<9x32xf32>
    %195 = arith.cmpf olt, %165, %194 : vector<9x32xf32>
    %cst_81 = arith.constant 0.000000e+00 : f32
    %196 = vector.broadcast %cst_81 : f32 to vector<9x32xf32>
    %197 = arith.subf %196, %193 : vector<9x32xf32>
    %198 = arith.select %195, %197, %193 : vector<9x32xi1>, vector<9x32xf32>
    %cst_82 = arith.constant 5.000000e-01 : f32
    %199 = vector.broadcast %cst_82 : f32 to vector<9x32xf32>
    %200 = arith.mulf %199, %163 : vector<9x32xf32>
    %cst_83 = arith.constant 1.000000e+00 : f32
    %201 = vector.broadcast %cst_83 : f32 to vector<9x32xf32>
    %202 = arith.addf %201, %198 : vector<9x32xf32>
    %203 = arith.mulf %200, %202 : vector<9x32xf32>
    %204 = arith.truncf %203 : vector<9x32xf32> to vector<9x32xbf16>
    %c0_84 = arith.constant 0 : index
    %c0_85 = arith.constant 0 : index
    %c0_86 = arith.constant 0 : index
    %205 = vector.load %arg14[%c0_84, %c0_85, %c0_86] : memref<1x32x32xbf16, #tpu.memory_space<vmem>>, vector<1x32x32xbf16>
    %206 = vector.shape_cast %205 : vector<1x32x32xbf16> to vector<32x32xbf16>
    %cst_87 = arith.constant dense<0.000000e+00> : vector<9x32xf32>
    %207 = tpu.matmul %204, %206, %cst_87 {dimension_numbers = #tpu.dot_dimension_numbers<[1], [0], [0], [1], [0, 0, 1, 1], [], []>} : vector<9x32xbf16>, vector<32x32xbf16>, vector<9x32xf32> -> vector<9x32xf32>
    %c0_88 = arith.constant 0 : index
    %c0_89 = arith.constant 0 : index
    %c0_90 = arith.constant 0 : index
    %208 = vector.load %arg15[%c0_88, %c0_89, %c0_90] : memref<1x1x32xf32, #tpu.memory_space<vmem>>, vector<1x1x32xf32>
    %209 = vector.shape_cast %208 : vector<1x1x32xf32> to vector<1x32xf32>
    %210 = vector.broadcast %209 : vector<1x32xf32> to vector<9x32xf32>
    %211 = arith.addf %207, %210 : vector<9x32xf32>
    %212 = arith.addf %129, %211 : vector<9x32xf32>
    %c0_91 = arith.constant 0 : index
    %c0_92 = arith.constant 0 : index
    %c0_93 = arith.constant 0 : index
    %213 = vector.load %arg16[%c0_91, %c0_92, %c0_93] : memref<1x9x32xf32, #tpu.memory_space<vmem>>, vector<1x9x32xf32>
    %214 = vector.shape_cast %213 : vector<1x9x32xf32> to vector<9x32xf32>
    %215 = vector.shape_cast %212 : vector<9x32xf32> to vector<1x9x32xf32>
    tpu.vector_store %arg16[%c0_91, %c0_92, %c0_93], %215 {strides = array<i32>} : memref<1x9x32xf32, #tpu.memory_space<vmem>>, vector<1x9x32xf32>,
    return
  }
  func.func @transform_0(%arg0: i32, %arg1: i32) -> (i32, i32, i32) {
    %c0_i32 = arith.constant 0 : i32
    %c0_i32_0 = arith.constant 0 : i32
    %c0_i32_1 = arith.constant 0 : i32
    return %arg0, %c0_i32, %c0_i32_0 : i32, i32, i32
  }
  func.func @transform_1(%arg0: i32, %arg1: i32) -> (i32, i32, i32) {
    %c0_i32 = arith.constant 0 : i32
    %c0_i32_0 = arith.constant 0 : i32
    %c0_i32_1 = arith.constant 0 : i32
    return %arg1, %c0_i32, %c0_i32_0 : i32, i32, i32
  }
  func.func @transform_2(%arg0: i32, %arg1: i32) -> (i32, i32, i32) {
    %c0_i32 = arith.constant 0 : i32
    %c0_i32_0 = arith.constant 0 : i32
    %c0_i32_1 = arith.constant 0 : i32
    return %arg1, %c0_i32, %c0_i32_0 : i32, i32, i32
  }
  func.func @transform_3(%arg0: i32, %arg1: i32) -> (i32, i32, i32) {
    %c0_i32 = arith.constant 0 : i32
    %c0_i32_0 = arith.constant 0 : i32
    %c0_i32_1 = arith.constant 0 : i32
    return %arg1, %c0_i32, %c0_i32_0 : i32, i32, i32
  }
  func.func @transform_4(%arg0: i32, %arg1: i32) -> (i32, i32, i32) {
    %c0_i32 = arith.constant 0 : i32
    %c0_i32_0 = arith.constant 0 : i32
    %c0_i32_1 = arith.constant 0 : i32
    return %arg1, %c0_i32, %c0_i32_0 : i32, i32, i32
  }
  func.func @transform_5(%arg0: i32, %arg1: i32) -> (i32, i32, i32) {
    %c0_i32 = arith.constant 0 : i32
    %c0_i32_0 = arith.constant 0 : i32
    %c0_i32_1 = arith.constant 0 : i32
    return %arg1, %c0_i32, %c0_i32_0 : i32, i32, i32
  }
  func.func @transform_6(%arg0: i32, %arg1: i32) -> (i32, i32, i32) {
    %c0_i32 = arith.constant 0 : i32
    %c0_i32_0 = arith.constant 0 : i32
    %c0_i32_1 = arith.constant 0 : i32
    return %arg1, %c0_i32, %c0_i32_0 : i32, i32, i32
  }
  func.func @transform_7(%arg0: i32, %arg1: i32) -> (i32, i32, i32) {
    %c0_i32 = arith.constant 0 : i32
    %c0_i32_0 = arith.constant 0 : i32
    %c0_i32_1 = arith.constant 0 : i32
    return %arg1, %c0_i32, %c0_i32_0 : i32, i32, i32
  }
  func.func @transform_8(%arg0: i32, %arg1: i32) -> (i32, i32, i32) {
    %c0_i32 = arith.constant 0 : i32
    %c0_i32_0 = arith.constant 0 : i32
    %c0_i32_1 = arith.constant 0 : i32
    return %arg1, %c0_i32, %c0_i32_0 : i32, i32, i32
  }
  func.func @transform_9(%arg0: i32, %arg1: i32) -> (i32, i32, i32) {
    %c0_i32 = arith.constant 0 : i32
    %c0_i32_0 = arith.constant 0 : i32
    %c0_i32_1 = arith.constant 0 : i32
    return %arg1, %c0_i32, %c0_i32_0 : i32, i32, i32
  }
  func.func @transform_10(%arg0: i32, %arg1: i32) -> (i32, i32, i32) {
    %c0_i32 = arith.constant 0 : i32
    %c0_i32_0 = arith.constant 0 : i32
    %c0_i32_1 = arith.constant 0 : i32
    return %arg1, %c0_i32, %c0_i32_0 : i32, i32, i32
  }
  func.func @transform_11(%arg0: i32, %arg1: i32) -> (i32, i32, i32) {
    %c0_i32 = arith.constant 0 : i32
    %c0_i32_0 = arith.constant 0 : i32
    %c0_i32_1 = arith.constant 0 : i32
    return %arg1, %c0_i32, %c0_i32_0 : i32, i32, i32
  }
  func.func @transform_12(%arg0: i32, %arg1: i32) -> (i32, i32, i32) {
    %c0_i32 = arith.constant 0 : i32
    %c0_i32_0 = arith.constant 0 : i32
    %c0_i32_1 = arith.constant 0 : i32
    return %arg1, %c0_i32, %c0_i32_0 : i32, i32, i32
  }
  func.func @transform_13(%arg0: i32, %arg1: i32) -> (i32, i32, i32) {
    %c0_i32 = arith.constant 0 : i32
    %c0_i32_0 = arith.constant 0 : i32
    %c0_i32_1 = arith.constant 0 : i32
    return %arg1, %c0_i32, %c0_i32_0 : i32, i32, i32
  }
  func.func @transform_14(%arg0: i32, %arg1: i32) -> (i32, i32, i32) {
    %c0_i32 = arith.constant 0 : i32
    %c0_i32_0 = arith.constant 0 : i32
    %c0_i32_1 = arith.constant 0 : i32
    return %arg0, %c0_i32, %c0_i32_0 : i32, i32, i32
  }
}

</mosaic_0001>

<llo_original>
// kernel: spectralformer_forward.1
$region0: #{spectralformer_forward.1}
  #allocation0 [shape = 'u32[]', space=smem, size = 0x4, offset = 0x4, fixed_abs, tag = 'smem constant byte address 0x4 - core index']
  #allocation1 [shape = 'u32[72,128]{1,0:T(1,128)}', space=vmem, size = 0x9000, scoped, tag = 'internal scratch']
  %s0 = inlined_call_operand.vmem [shape: f32[2,9,32], index: 0, kind: input, shape index: {}]
  %s1 = inlined_call_operand.vmem [shape: f32[2,1,32], index: 1, kind: input, shape index: {}]
  %s2 = inlined_call_operand.vmem [shape: f32[2,1,32], index: 2, kind: input, shape index: {}]
  %s3 = inlined_call_operand.vmem [shape: bf16[2,32,64], index: 3, kind: input, shape index: {}]
  %s4 = inlined_call_operand.vmem [shape: bf16[2,32,64], index: 4, kind: input, shape index: {}]
  %s5 = inlined_call_operand.vmem [shape: bf16[2,32,64], index: 5, kind: input, shape index: {}]
  %s6 = inlined_call_operand.vmem [shape: bf16[2,64,32], index: 6, kind: input, shape index: {}]
  %s7 = inlined_call_operand.vmem [shape: f32[2,1,32], index: 7, kind: input, shape index: {}]
  %s8 = inlined_call_operand.vmem [shape: f32[2,1,32], index: 8, kind: input, shape index: {}]
  %s9 = inlined_call_operand.vmem [shape: f32[2,1,32], index: 9, kind: input, shape index: {}]
  %s10 = inlined_call_operand.vmem [shape: bf16[2,32,32], index: 10, kind: input, shape index: {}]
  %s11 = inlined_call_operand.vmem [shape: f32[2,1,32], index: 11, kind: input, shape index: {}]
  %s12 = inlined_call_operand.vmem [shape: bf16[2,32,32], index: 12, kind: input, shape index: {}]
  %s13 = inlined_call_operand.vmem [shape: f32[2,1,32], index: 13, kind: input, shape index: {}]
  %s14 = inlined_call_operand.vmem [shape: f32[2,9,32], index: 14, kind: output, shape index: {}]
  %s15 = sld [smem:[#allocation0]]
  $region93: #{spectralformer_forward.1} parent=0
    _
  %s17 = ssub.s32 1, %s15
  %s18 = scalar_select 0, %s17, %s15
  loop: start=0, step=1, limit=6
  $region2: #{spectralformer_forward.1} parent=0 // loop_pre_header
    _
  $region3: #{spectralformer_forward.1} parent=0 // loop_header
    %s20 = sphi 0, %s24
    %p21 = scmp.ge.s32.totalorder %s20, 6
    %s27 = sphi 0, %s39
    %s28 = sphi 0, %s35
    %s29 = sphi 0, %s27
    %s30 = sphi 0, %s28
    %s31 = sphi 0, %s29
    %s32 = sphi 0, %s30
    %s42 = sphi 0, %s44
    %s45 = sphi 0, %s42
    %s46 = sphi 0, %s45
    %s62 = sphi 0, %s46
    %s68 = sphi 0, %s70
    %s71 = sphi 0, %s68
    %s72 = sphi 0, %s71
    %s88 = sphi 0, %s72
    %s94 = sphi 0, %s96
    %s97 = sphi 0, %s94
    %s98 = sphi 0, %s97
    %s114 = sphi 0, %s98
    %s120 = sphi 0, %s122
    %s123 = sphi 0, %s120
    %s124 = sphi 0, %s123
    %s140 = sphi 0, %s124
    %s146 = sphi 0, %s148
    %s149 = sphi 0, %s146
    %s150 = sphi 0, %s149
    %s166 = sphi 0, %s150
    %s172 = sphi 0, %s174
    %s175 = sphi 0, %s172
    %s176 = sphi 0, %s175
    %s192 = sphi 0, %s176
    %s198 = sphi 0, %s200
    %s201 = sphi 0, %s198
    %s202 = sphi 0, %s201
    %s218 = sphi 0, %s202
    %s224 = sphi 0, %s226
    %s227 = sphi 0, %s224
    %s228 = sphi 0, %s227
    %s244 = sphi 0, %s228
    %s250 = sphi 0, %s252
    %s253 = sphi 0, %s250
    %s254 = sphi 0, %s253
    %s270 = sphi 0, %s254
    %s276 = sphi 0, %s278
    %s279 = sphi 0, %s276
    %s280 = sphi 0, %s279
    %s296 = sphi 0, %s280
    %s302 = sphi 0, %s304
    %s305 = sphi 0, %s302
    %s306 = sphi 0, %s305
    %s322 = sphi 0, %s306
    %s328 = sphi 0, %s330
    %s331 = sphi 0, %s328
    %s332 = sphi 0, %s331
    %s348 = sphi 0, %s332
    %s354 = sphi 0, %s356
    %s357 = sphi 0, %s354
    %s358 = sphi 0, %s357
    %s374 = sphi 0, %s358
    %s380 = sphi 0, %s382
    %s383 = sphi 0, %s380
    %s384 = sphi 0, %s383
    %s400 = sphi 0, %s384
    %s406 = sphi 0, %s408
    %s409 = sphi 0, %s406
    %s410 = sphi 0, %s409
    %s426 = sphi 0, %s410
  $region4: #{spectralformer_forward.1} parent=0 // loop_header_branch
    %23 = sbr.rel (%p21) target = $region8
  $region5: #{spectralformer_forward.1} parent=0 // loop_body
    %s25 = ssub.s32 %s20, 1
    %s26 = ssub.s32 %s20, 2
    %s33 = sadd.s32 1, %s28
    %p34 = scmp.ge.s32.totalorder %s33, 2
    %s35 = scalar_select %p34, 0, %s33
    %s36 = sadd.s32 1, %s27
    %s37 = scalar_select %p34, %s36, %s27
    %p38 = scmp.ge.s32.totalorder %s37, 2
    %s39 = scalar_select %p38, 0, %s37
    %s40 = ssub.s32 %s27, %s39
    %p41 = scmp.eq.s32.totalorder %s40, 0
    %s43 = sadd.s32 %s42, 1
    %s44 = scalar_select %p41, %s42, %s43
    %p47 = pneg %p41
    %p48 = scmp.eq.s32.totalorder %s20, 3
    %p49 = por %p47, %p48
    %p50 = scmp.ne.s32.totalorder %s42, %s45
    %p51 = scmp.eq.s32.totalorder %s20, 0
    %p52 = por %p50, %p51
    %p53 = scmp.ne.s32.totalorder %s42, %s45
    %p54 = scmp.eq.s32.totalorder %s25, 3
    %p55 = por %p53, %p54
    %p56 = scmp.ne.s32.totalorder %s45, %s46
    %p57 = scmp.eq.s32.totalorder %s25, 0
    %p58 = por %p56, %p57
    %p59 = scmp.ne.s32.totalorder %s45, %s46
    %p60 = scmp.eq.s32.totalorder %s26, 3
    %p61 = por %p59, %p60
    %p63 = scmp.ne.s32.totalorder %s46, %s62
    %p64 = scmp.eq.s32.totalorder %s26, 0
    %p65 = por %p63, %p64
    %s66 = ssub.s32 %s28, %s35
    %p67 = scmp.eq.s32.totalorder %s66, 0
    %s69 = sadd.s32 %s68, 1
    %s70 = scalar_select %p67, %s68, %s69
    %p73 = pneg %p67
    %p74 = scmp.eq.s32.totalorder %s20, 3
    %p75 = por %p73, %p74
    %p76 = scmp.ne.s32.totalorder %s68, %s71
    %p77 = scmp.eq.s32.totalorder %s20, 0
    %p78 = por %p76, %p77
    %p79 = scmp.ne.s32.totalorder %s68, %s71
    %p80 = scmp.eq.s32.totalorder %s25, 3
    %p81 = por %p79, %p80
    %p82 = scmp.ne.s32.totalorder %s71, %s72
    %p83 = scmp.eq.s32.totalorder %s25, 0
    %p84 = por %p82, %p83
    %p85 = scmp.ne.s32.totalorder %s71, %s72
    %p86 = scmp.eq.s32.totalorder %s26, 3
    %p87 = por %p85, %p86
    %p89 = scmp.ne.s32.totalorder %s72, %s88
    %p90 = scmp.eq.s32.totalorder %s26, 0
    %p91 = por %p89, %p90
    %s92 = ssub.s32 %s28, %s35
    %p93 = scmp.eq.s32.totalorder %s92, 0
    %s95 = sadd.s32 %s94, 1
    %s96 = scalar_select %p93, %s94, %s95
    %p99 = pneg %p93
    %p100 = scmp.eq.s32.totalorder %s20, 3
    %p101 = por %p99, %p100
    %p102 = scmp.ne.s32.totalorder %s94, %s97
    %p103 = scmp.eq.s32.totalorder %s20, 0
    %p104 = por %p102, %p103
    %p105 = scmp.ne.s32.totalorder %s94, %s97
    %p106 = scmp.eq.s32.totalorder %s25, 3
    %p107 = por %p105, %p106
    %p108 = scmp.ne.s32.totalorder %s97, %s98
    %p109 = scmp.eq.s32.totalorder %s25, 0
    %p110 = por %p108, %p109
    %p111 = scmp.ne.s32.totalorder %s97, %s98
    %p112 = scmp.eq.s32.totalorder %s26, 3
    %p113 = por %p111, %p112
    %p115 = scmp.ne.s32.totalorder %s98, %s114
    %p116 = scmp.eq.s32.totalorder %s26, 0
    %p117 = por %p115, %p116
    %s118 = ssub.s32 %s28, %s35
    %p119 = scmp.eq.s32.totalorder %s118, 0
    %s121 = sadd.s32 %s120, 1
    %s122 = scalar_select %p119, %s120, %s121
    %p125 = pneg %p119
    %p126 = scmp.eq.s32.totalorder %s20, 3
    %p127 = por %p125, %p126
    %p128 = scmp.ne.s32.totalorder %s120, %s123
    %p129 = scmp.eq.s32.totalorder %s20, 0
    %p130 = por %p128, %p129
    %p131 = scmp.ne.s32.totalorder %s120, %s123
    %p132 = scmp.eq.s32.totalorder %s25, 3
    %p133 = por %p131, %p132
    %p134 = scmp.ne.s32.totalorder %s123, %s124
    %p135 = scmp.eq.s32.totalorder %s25, 0
    %p136 = por %p134, %p135
    %p137 = scmp.ne.s32.totalorder %s123, %s124
    %p138 = scmp.eq.s32.totalorder %s26, 3
    %p139 = por %p137, %p138
    %p141 = scmp.ne.s32.totalorder %s124, %s140
    %p142 = scmp.eq.s32.totalorder %s26, 0
    %p143 = por %p141, %p142
    %s144 = ssub.s32 %s28, %s35
    %p145 = scmp.eq.s32.totalorder %s144, 0
    %s147 = sadd.s32 %s146, 1
    %s148 = scalar_select %p145, %s146, %s147
    %p151 = pneg %p145
    %p152 = scmp.eq.s32.totalorder %s20, 3
    %p153 = por %p151, %p152
    %p154 = scmp.ne.s32.totalorder %s146, %s149
    %p155 = scmp.eq.s32.totalorder %s20, 0
    %p156 = por %p154, %p155
    %p157 = scmp.ne.s32.totalorder %s146, %s149
    %p158 = scmp.eq.s32.totalorder %s25, 3
    %p159 = por %p157, %p158
    %p160 = scmp.ne.s32.totalorder %s149, %s150
    %p161 = scmp.eq.s32.totalorder %s25, 0
    %p162 = por %p160, %p161
    %p163 = scmp.ne.s32.totalorder %s149, %s150
    %p164 = scmp.eq.s32.totalorder %s26, 3
    %p165 = por %p163, %p164
    %p167 = scmp.ne.s32.totalorder %s150, %s166
    %p168 = scmp.eq.s32.totalorder %s26, 0
    %p169 = por %p167, %p168
    %s170 = ssub.s32 %s28, %s35
    %p171 = scmp.eq.s32.totalorder %s170, 0
    %s173 = sadd.s32 %s172, 1
    %s174 = scalar_select %p171, %s172, %s173
    %p177 = pneg %p171
    %p178 = scmp.eq.s32.totalorder %s20, 3
    %p179 = por %p177, %p178
    %p180 = scmp.ne.s32.totalorder %s172, %s175
    %p181 = scmp.eq.s32.totalorder %s20, 0
    %p182 = por %p180, %p181
    %p183 = scmp.ne.s32.totalorder %s172, %s175
    %p184 = scmp.eq.s32.totalorder %s25, 3
    %p185 = por %p183, %p184
    %p186 = scmp.ne.s32.totalorder %s175, %s176
    %p187 = scmp.eq.s32.totalorder %s25, 0
    %p188 = por %p186, %p187
    %p189 = scmp.ne.s32.totalorder %s175, %s176
    %p190 = scmp.eq.s32.totalorder %s26, 3
    %p191 = por %p189, %p190
    %p193 = scmp.ne.s32.totalorder %s176, %s192
    %p194 = scmp.eq.s32.totalorder %s26, 0
    %p195 = por %p193, %p194
    %s196 = ssub.s32 %s28, %s35
    %p197 = scmp.eq.s32.totalorder %s196, 0
    %s199 = sadd.s32 %s198, 1
    %s200 = scalar_select %p197, %s198, %s199
    %p203 = pneg %p197
    %p204 = scmp.eq.s32.totalorder %s20, 3
    %p205 = por %p203, %p204
    %p206 = scmp.ne.s32.totalorder %s198, %s201
    %p207 = scmp.eq.s32.totalorder %s20, 0
    %p208 = por %p206, %p207
    %p209 = scmp.ne.s32.totalorder %s198, %s201
    %p210 = scmp.eq.s32.totalorder %s25, 3
    %p211 = por %p209, %p210
    %p212 = scmp.ne.s32.totalorder %s201, %s202
    %p213 = scmp.eq.s32.totalorder %s25, 0
    %p214 = por %p212, %p213
    %p215 = scmp.ne.s32.totalorder %s201, %s202
    %p216 = scmp.eq.s32.totalorder %s26, 3
    %p217 = por %p215, %p216
    %p219 = scmp.ne.s32.totalorder %s202, %s218
    %p220 = scmp.eq.s32.totalorder %s26, 0
    %p221 = por %p219, %p220
    %s222 = ssub.s32 %s28, %s35
    %p223 = scmp.eq.s32.totalorder %s222, 0
    %s225 = sadd.s32 %s224, 1
    %s226 = scalar_select %p223, %s224, %s225
    %p229 = pneg %p223
    %p230 = scmp.eq.s32.totalorder %s20, 3
    %p231 = por %p229, %p230
    %p232 = scmp.ne.s32.totalorder %s224, %s227
    %p233 = scmp.eq.s32.totalorder %s20, 0
    %p234 = por %p232, %p233
    %p235 = scmp.ne.s32.totalorder %s224, %s227
    %p236 = scmp.eq.s32.totalorder %s25, 3
    %p237 = por %p235, %p236
    %p238 = scmp.ne.s32.totalorder %s227, %s228
    %p239 = scmp.eq.s32.totalorder %s25, 0
    %p240 = por %p238, %p239
    %p241 = scmp.ne.s32.totalorder %s227, %s228
    %p242 = scmp.eq.s32.totalorder %s26, 3
    %p243 = por %p241, %p242
    %p245 = scmp.ne.s32.totalorder %s228, %s244
    %p246 = scmp.eq.s32.totalorder %s26, 0
    %p247 = por %p245, %p246
    %s248 = ssub.s32 %s28, %s35
    %p249 = scmp.eq.s32.totalorder %s248, 0
    %s251 = sadd.s32 %s250, 1
    %s252 = scalar_select %p249, %s250, %s251
    %p255 = pneg %p249
    %p256 = scmp.eq.s32.totalorder %s20, 3
    %p257 = por %p255, %p256
    %p258 = scmp.ne.s32.totalorder %s250, %s253
    %p259 = scmp.eq.s32.totalorder %s20, 0
    %p260 = por %p258, %p259
    %p261 = scmp.ne.s32.totalorder %s250, %s253
    %p262 = scmp.eq.s32.totalorder %s25, 3
    %p263 = por %p261, %p262
    %p264 = scmp.ne.s32.totalorder %s253, %s254
    %p265 = scmp.eq.s32.totalorder %s25, 0
    %p266 = por %p264, %p265
    %p267 = scmp.ne.s32.totalorder %s253, %s254
    %p268 = scmp.eq.s32.totalorder %s26, 3
    %p269 = por %p267, %p268
    %p271 = scmp.ne.s32.totalorder %s254, %s270
    %p272 = scmp.eq.s32.totalorder %s26, 0
    %p273 = por %p271, %p272
    %s274 = ssub.s32 %s28, %s35
    %p275 = scmp.eq.s32.totalorder %s274, 0
    %s277 = sadd.s32 %s276, 1
    %s278 = scalar_select %p275, %s276, %s277
    %p281 = pneg %p275
    %p282 = scmp.eq.s32.totalorder %s20, 3
    %p283 = por %p281, %p282
    %p284 = scmp.ne.s32.totalorder %s276, %s279
    %p285 = scmp.eq.s32.totalorder %s20, 0
    %p286 = por %p284, %p285
    %p287 = scmp.ne.s32.totalorder %s276, %s279
    %p288 = scmp.eq.s32.totalorder %s25, 3
    %p289 = por %p287, %p288
    %p290 = scmp.ne.s32.totalorder %s279, %s280
    %p291 = scmp.eq.s32.totalorder %s25, 0
    %p292 = por %p290, %p291
    %p293 = scmp.ne.s32.totalorder %s279, %s280
    %p294 = scmp.eq.s32.totalorder %s26, 3
    %p295 = por %p293, %p294
    %p297 = scmp.ne.s32.totalorder %s280, %s296
    %p298 = scmp.eq.s32.totalorder %s26, 0
    %p299 = por %p297, %p298
    %s300 = ssub.s32 %s28, %s35
    %p301 = scmp.eq.s32.totalorder %s300, 0
    %s303 = sadd.s32 %s302, 1
    %s304 = scalar_select %p301, %s302, %s303
    %p307 = pneg %p301
    %p308 = scmp.eq.s32.totalorder %s20, 3
    %p309 = por %p307, %p308
    %p310 = scmp.ne.s32.totalorder %s302, %s305
    %p311 = scmp.eq.s32.totalorder %s20, 0
    %p312 = por %p310, %p311
    %p313 = scmp.ne.s32.totalorder %s302, %s305
    %p314 = scmp.eq.s32.totalorder %s25, 3
    %p315 = por %p313, %p314
    %p316 = scmp.ne.s32.totalorder %s305, %s306
    %p317 = scmp.eq.s32.totalorder %s25, 0
    %p318 = por %p316, %p317
    %p319 = scmp.ne.s32.totalorder %s305, %s306
    %p320 = scmp.eq.s32.totalorder %s26, 3
    %p321 = por %p319, %p320
    %p323 = scmp.ne.s32.totalorder %s306, %s322
    %p324 = scmp.eq.s32.totalorder %s26, 0
    %p325 = por %p323, %p324
    %s326 = ssub.s32 %s28, %s35
    %p327 = scmp.eq.s32.totalorder %s326, 0
    %s329 = sadd.s32 %s328, 1
    %s330 = scalar_select %p327, %s328, %s329
    %p333 = pneg %p327
    %p334 = scmp.eq.s32.totalorder %s20, 3
    %p335 = por %p333, %p334
    %p336 = scmp.ne.s32.totalorder %s328, %s331
    %p337 = scmp.eq.s32.totalorder %s20, 0
    %p338 = por %p336, %p337
    %p339 = scmp.ne.s32.totalorder %s328, %s331
    %p340 = scmp.eq.s32.totalorder %s25, 3
    %p341 = por %p339, %p340
    %p342 = scmp.ne.s32.totalorder %s331, %s332
    %p343 = scmp.eq.s32.totalorder %s25, 0
    %p344 = por %p342, %p343
    %p345 = scmp.ne.s32.totalorder %s331, %s332
    %p346 = scmp.eq.s32.totalorder %s26, 3
    %p347 = por %p345, %p346
    %p349 = scmp.ne.s32.totalorder %s332, %s348
    %p350 = scmp.eq.s32.totalorder %s26, 0
    %p351 = por %p349, %p350
    %s352 = ssub.s32 %s28, %s35
    %p353 = scmp.eq.s32.totalorder %s352, 0
    %s355 = sadd.s32 %s354, 1
    %s356 = scalar_select %p353, %s354, %s355
    %p359 = pneg %p353
    %p360 = scmp.eq.s32.totalorder %s20, 3
    %p361 = por %p359, %p360
    %p362 = scmp.ne.s32.totalorder %s354, %s357
    %p363 = scmp.eq.s32.totalorder %s20, 0
    %p364 = por %p362, %p363
    %p365 = scmp.ne.s32.totalorder %s354, %s357
    %p366 = scmp.eq.s32.totalorder %s25, 3
    %p367 = por %p365, %p366
    %p368 = scmp.ne.s32.totalorder %s357, %s358
    %p369 = scmp.eq.s32.totalorder %s25, 0
    %p370 = por %p368, %p369
    %p371 = scmp.ne.s32.totalorder %s357, %s358
    %p372 = scmp.eq.s32.totalorder %s26, 3
    %p373 = por %p371, %p372
    %p375 = scmp.ne.s32.totalorder %s358, %s374
    %p376 = scmp.eq.s32.totalorder %s26, 0
    %p377 = por %p375, %p376
    %s378 = ssub.s32 %s28, %s35
    %p379 = scmp.eq.s32.totalorder %s378, 0
    %s381 = sadd.s32 %s380, 1
    %s382 = scalar_select %p379, %s380, %s381
    %p385 = pneg %p379
    %p386 = scmp.eq.s32.totalorder %s20, 3
    %p387 = por %p385, %p386
    %p388 = scmp.ne.s32.totalorder %s380, %s383
    %p389 = scmp.eq.s32.totalorder %s20, 0
    %p390 = por %p388, %p389
    %p391 = scmp.ne.s32.totalorder %s380, %s383
    %p392 = scmp.eq.s32.totalorder %s25, 3
    %p393 = por %p391, %p392
    %p394 = scmp.ne.s32.totalorder %s383, %s384
    %p395 = scmp.eq.s32.totalorder %s25, 0
    %p396 = por %p394, %p395
    %p397 = scmp.ne.s32.totalorder %s383, %s384
    %p398 = scmp.eq.s32.totalorder %s26, 3
    %p399 = por %p397, %p398
    %p401 = scmp.ne.s32.totalorder %s384, %s400
    %p402 = scmp.eq.s32.totalorder %s26, 0
    %p403 = por %p401, %p402
    %s404 = ssub.s32 %s27, %s39
    %p405 = scmp.eq.s32.totalorder %s404, 0
    %s407 = sadd.s32 %s406, 1
    %s408 = scalar_select %p405, %s406, %s407
    %p411 = pneg %p405
    %p412 = scmp.eq.s32.totalorder %s20, 3
    %p413 = por %p411, %p412
    %p414 = scmp.ne.s32.totalorder %s406, %s409
    %p415 = scmp.eq.s32.totalorder %s20, 0
    %p416 = por %p414, %p415
    %p417 = scmp.ne.s32.totalorder %s406, %s409
    %p418 = scmp.eq.s32.totalorder %s25, 3
    %p419 = por %p417, %p418
    %p420 = scmp.ne.s32.totalorder %s409, %s410
    %p421 = scmp.eq.s32.totalorder %s25, 0
    %p422 = por %p420, %p421
    %p423 = scmp.ne.s32.totalorder %s409, %s410
    %p424 = scmp.eq.s32.totalorder %s26, 3
    %p425 = por %p423, %p424
    %p427 = scmp.ne.s32.totalorder %s410, %s426
    %p428 = scmp.eq.s32.totalorder %s26, 0
    %p429 = por %p427, %p428
    %p430 = scmp.le.s32.totalorder 1, %s20
    %p431 = scmp.lt.s32.totalorder %s20, 5
    %p432 = pnand %p430, %p431
    %p433 = pneg %p432
    // Predicated region
    $region9: #{spectralformer_forward.1} parent=5 // pred_check
      _
    $region10: #{spectralformer_forward.1} parent=5 // pred_check_branch
      %435 = sbr.rel (%p432) target = $region12
    $region11: #{spectralformer_forward.1} parent=5 // pred_region
      %s436 = ssub.s32 %s20, 1
    $region12: #{spectralformer_forward.1} parent=5 // pred_fallthru
      _
    %p437 = scmp.lt.s32.totalorder %s20, 4
    // Predicated region
    $region13: #{spectralformer_forward.1} parent=5 // pred_check
      %p438 = pneg %p437
    $region14: #{spectralformer_forward.1} parent=5 // pred_check_branch
      %440 = sbr.rel (%p438) target = $region16
    $region15: #{spectralformer_forward.1} parent=5 // pred_region
      // Predicated region
      $region17: #{spectralformer_forward.1} parent=15 // pred_check
        %p441 = pneg %p52
      $region18: #{spectralformer_forward.1} parent=15 // pred_check_branch
        %443 = sbr.rel (%p441) target = $region20
      $region19: #{spectralformer_forward.1} parent=15 // pred_region
        %p444 = scmp.lt.s32.totalorder %s27, 1
        %s445 = scalar_select %p444, %s27, 1
        %s446 = smul.addr %s445, 2
        %s447 = smul.addr %s446, 8
        %s448 = scalar_lea.vmem %s0, %s447
      $region20: #{spectralformer_forward.1} parent=15 // pred_fallthru
        _
      // Predicated region
      $region21: #{spectralformer_forward.1} parent=15 // pred_check
        %p449 = pneg %p78
      $region22: #{spectralformer_forward.1} parent=15 // pred_check_branch
        %451 = sbr.rel (%p449) target = $region24
      $region23: #{spectralformer_forward.1} parent=15 // pred_region
        %p452 = scmp.lt.s32.totalorder %s28, 1
        %s453 = scalar_select %p452, %s28, 1
        %s454 = scalar_lea.vmem %s1, %s453
      $region24: #{spectralformer_forward.1} parent=15 // pred_fallthru
        _
      // Predicated region
      $region25: #{spectralformer_forward.1} parent=15 // pred_check
        %p455 = pneg %p104
      $region26: #{spectralformer_forward.1} parent=15 // pred_check_branch
        %457 = sbr.rel (%p455) target = $region28
      $region27: #{spectralformer_forward.1} parent=15 // pred_region
        %p458 = scmp.lt.s32.totalorder %s28, 1
        %s459 = scalar_select %p458, %s28, 1
        %s460 = scalar_lea.vmem %s2, %s459
      $region28: #{spectralformer_forward.1} parent=15 // pred_fallthru
        _
      // Predicated region
      $region29: #{spectralformer_forward.1} parent=15 // pred_check
        %p461 = pneg %p130
      $region30: #{spectralformer_forward.1} parent=15 // pred_check_branch
        %463 = sbr.rel (%p461) target = $region32
      $region31: #{spectralformer_forward.1} parent=15 // pred_region
        %p464 = scmp.lt.s32.totalorder %s28, 1
        %s465 = scalar_select %p464, %s28, 1
        %s466 = smul.addr %s465, 4
        %s467 = smul.addr %s466, 4
        %s468 = scalar_lea.vmem %s3, %s467
      $region32: #{spectralformer_forward.1} parent=15 // pred_fallthru
        _
      // Predicated region
      $region33: #{spectralformer_forward.1} parent=15 // pred_check
        %p469 = pneg %p156
      $region34: #{spectralformer_forward.1} parent=15 // pred_check_branch
        %471 = sbr.rel (%p469) target = $region36
      $region35: #{spectralformer_forward.1} parent=15 // pred_region
        %p472 = scmp.lt.s32.totalorder %s28, 1
        %s473 = scalar_select %p472, %s28, 1
        %s474 = smul.addr %s473, 4
        %s475 = smul.addr %s474, 4
        %s476 = scalar_lea.vmem %s4, %s475
      $region36: #{spectralformer_forward.1} parent=15 // pred_fallthru
        _
      // Predicated region
      $region37: #{spectralformer_forward.1} parent=15 // pred_check
        %p477 = pneg %p182
      $region38: #{spectralformer_forward.1} parent=15 // pred_check_branch
        %479 = sbr.rel (%p477) target = $region40
      $region39: #{spectralformer_forward.1} parent=15 // pred_region
        %p480 = scmp.lt.s32.totalorder %s28, 1
        %s481 = scalar_select %p480, %s28, 1
        %s482 = smul.addr %s481, 4
        %s483 = smul.addr %s482, 4
        %s484 = scalar_lea.vmem %s5, %s483
      $region40: #{spectralformer_forward.1} parent=15 // pred_fallthru
        _
      // Predicated region
      $region41: #{spectralformer_forward.1} parent=15 // pred_check
        %p485 = pneg %p208
      $region42: #{spectralformer_forward.1} parent=15 // pred_check_branch
        %487 = sbr.rel (%p485) target = $region44
      $region43: #{spectralformer_forward.1} parent=15 // pred_region
        %p488 = scmp.lt.s32.totalorder %s28, 1
        %s489 = scalar_select %p488, %s28, 1
        %s490 = smul.addr %s489, 8
        %s491 = smul.addr %s490, 4
        %s492 = scalar_lea.vmem %s6, %s491
      $region44: #{spectralformer_forward.1} parent=15 // pred_fallthru
        _
      // Predicated region
      $region45: #{spectralformer_forward.1} parent=15 // pred_check
        %p493 = pneg %p234
      $region46: #{spectralformer_forward.1} parent=15 // pred_check_branch
        %495 = sbr.rel (%p493) target = $region48
      $region47: #{spectralformer_forward.1} parent=15 // pred_region
        %p496 = scmp.lt.s32.totalorder %s28, 1
        %s497 = scalar_select %p496, %s28, 1
        %s498 = scalar_lea.vmem %s7, %s497
      $region48: #{spectralformer_forward.1} parent=15 // pred_fallthru
        _
      // Predicated region
      $region49: #{spectralformer_forward.1} parent=15 // pred_check
        %p499 = pneg %p260
      $region50: #{spectralformer_forward.1} parent=15 // pred_check_branch
        %501 = sbr.rel (%p499) target = $region52
      $region51: #{spectralformer_forward.1} parent=15 // pred_region
        %p502 = scmp.lt.s32.totalorder %s28, 1
        %s503 = scalar_select %p502, %s28, 1
        %s504 = scalar_lea.vmem %s8, %s503
      $region52: #{spectralformer_forward.1} parent=15 // pred_fallthru
        _
      // Predicated region
      $region53: #{spectralformer_forward.1} parent=15 // pred_check
        %p505 = pneg %p286
      $region54: #{spectralformer_forward.1} parent=15 // pred_check_branch
        %507 = sbr.rel (%p505) target = $region56
      $region55: #{spectralformer_forward.1} parent=15 // pred_region
        %p508 = scmp.lt.s32.totalorder %s28, 1
        %s509 = scalar_select %p508, %s28, 1
        %s510 = scalar_lea.vmem %s9, %s509
      $region56: #{spectralformer_forward.1} parent=15 // pred_fallthru
        _
      // Predicated region
      $region57: #{spectralformer_forward.1} parent=15 // pred_check
        %p511 = pneg %p312
      $region58: #{spectralformer_forward.1} parent=15 // pred_check_branch
        %513 = sbr.rel (%p511) target = $region60
      $region59: #{spectralformer_forward.1} parent=15 // pred_region
        %p514 = scmp.lt.s32.totalorder %s28, 1
        %s515 = scalar_select %p514, %s28, 1
        %s516 = smul.addr %s515, 4
        %s517 = smul.addr %s516, 4
        %s518 = scalar_lea.vmem %s10, %s517
      $region60: #{spectralformer_forward.1} parent=15 // pred_fallthru
        _
      // Predicated region
      $region61: #{spectralformer_forward.1} parent=15 // pred_check
        %p519 = pneg %p338
      $region62: #{spectralformer_forward.1} parent=15 // pred_check_branch
        %521 = sbr.rel (%p519) target = $region64
      $region63: #{spectralformer_forward.1} parent=15 // pred_region
        %p522 = scmp.lt.s32.totalorder %s28, 1
        %s523 = scalar_select %p522, %s28, 1
        %s524 = scalar_lea.vmem %s11, %s523
      $region64: #{spectralformer_forward.1} parent=15 // pred_fallthru
        _
      // Predicated region
      $region65: #{spectralformer_forward.1} parent=15 // pred_check
        %p525 = pneg %p364
      $region66: #{spectralformer_forward.1} parent=15 // pred_check_branch
        %527 = sbr.rel (%p525) target = $region68
      $region67: #{spectralformer_forward.1} parent=15 // pred_region
        %p528 = scmp.lt.s32.totalorder %s28, 1
        %s529 = scalar_select %p528, %s28, 1
        %s530 = smul.addr %s529, 4
        %s531 = smul.addr %s530, 4
        %s532 = scalar_lea.vmem %s12, %s531
      $region68: #{spectralformer_forward.1} parent=15 // pred_fallthru
        _
      // Predicated region
      $region69: #{spectralformer_forward.1} parent=15 // pred_check
        %p533 = pneg %p390
      $region70: #{spectralformer_forward.1} parent=15 // pred_check_branch
        %535 = sbr.rel (%p533) target = $region72
      $region71: #{spectralformer_forward.1} parent=15 // pred_region
        %p536 = scmp.lt.s32.totalorder %s28, 1
        %s537 = scalar_select %p536, %s28, 1
        %s538 = scalar_lea.vmem %s13, %s537
      $region72: #{spectralformer_forward.1} parent=15 // pred_fallthru
        _
    $region16: #{spectralformer_forward.1} parent=5 // pred_fallthru
      _
    %p539 = scmp.le.s32.totalorder 1, %s20
    %p540 = scmp.lt.s32.totalorder %s20, 5
    %p541 = pnand %p539, %p540
    %p542 = pneg %p541
    // Predicated region
    $region73: #{spectralformer_forward.1} parent=5 // pred_check
      _
    $region74: #{spectralformer_forward.1} parent=5 // pred_check_branch
      %544 = sbr.rel (%p541) target = $region76
    $region75: #{spectralformer_forward.1} parent=5 // pred_region
      %s545 = ssub.s32 %s20, 1
      %p546 = scmp.lt.s32.totalorder %s29, 1
      %s547 = scalar_select %p546, %s29, 1
      %s548 = smul.addr %s547, 2
      %s549 = smul.addr %s548, 8
      %s550 = scalar_lea.vmem %s0, %s549
      %p551 = pneg %p58
      %p552 = pneg %p55
      %p553 = scmp.lt.s32.totalorder %s30, 1
      %s554 = scalar_select %p553, %s30, 1
      %s555 = scalar_lea.vmem %s1, %s554
      %p556 = pneg %p84
      %p557 = pneg %p81
      %p558 = scmp.lt.s32.totalorder %s30, 1
      %s559 = scalar_select %p558, %s30, 1
      %s560 = scalar_lea.vmem %s2, %s559
      %p561 = pneg %p110
      %p562 = pneg %p107
      %p563 = scmp.lt.s32.totalorder %s30, 1
      %s564 = scalar_select %p563, %s30, 1
      %s565 = smul.addr %s564, 4
      %s566 = smul.addr %s565, 4
      %s567 = scalar_lea.vmem %s3, %s566
      %p568 = pneg %p136
      %p569 = pneg %p133
      %p570 = scmp.lt.s32.totalorder %s30, 1
      %s571 = scalar_select %p570, %s30, 1
      %s572 = smul.addr %s571, 4
      %s573 = smul.addr %s572, 4
      %s574 = scalar_lea.vmem %s4, %s573
      %p575 = pneg %p162
      %p576 = pneg %p159
      %p577 = scmp.lt.s32.totalorder %s30, 1
      %s578 = scalar_select %p577, %s30, 1
      %s579 = smul.addr %s578, 4
      %s580 = smul.addr %s579, 4
      %s581 = scalar_lea.vmem %s5, %s580
      %p582 = pneg %p188
      %p583 = pneg %p185
      %p584 = scmp.lt.s32.totalorder %s30, 1
      %s585 = scalar_select %p584, %s30, 1
      %s586 = smul.addr %s585, 8
      %s587 = smul.addr %s586, 4
      %s588 = scalar_lea.vmem %s6, %s587
      %p589 = pneg %p214
      %p590 = pneg %p211
      %p591 = scmp.lt.s32.totalorder %s30, 1
      %s592 = scalar_select %p591, %s30, 1
      %s593 = scalar_lea.vmem %s7, %s592
      %p594 = pneg %p240
      %p595 = pneg %p237
      %p596 = scmp.lt.s32.totalorder %s30, 1
      %s597 = scalar_select %p596, %s30, 1
      %s598 = scalar_lea.vmem %s8, %s597
      %p599 = pneg %p266
      %p600 = pneg %p263
      %p601 = scmp.lt.s32.totalorder %s30, 1
      %s602 = scalar_select %p601, %s30, 1
      %s603 = scalar_lea.vmem %s9, %s602
      %p604 = pneg %p292
      %p605 = pneg %p289
      %p606 = scmp.lt.s32.totalorder %s30, 1
      %s607 = scalar_select %p606, %s30, 1
      %s608 = smul.addr %s607, 4
      %s609 = smul.addr %s608, 4
      %s610 = scalar_lea.vmem %s10, %s609
      %p611 = pneg %p318
      %p612 = pneg %p315
      %p613 = scmp.lt.s32.totalorder %s30, 1
      %s614 = scalar_select %p613, %s30, 1
      %s615 = scalar_lea.vmem %s11, %s614
      %p616 = pneg %p344
      %p617 = pneg %p341
      %p618 = scmp.lt.s32.totalorder %s30, 1
      %s619 = scalar_select %p618, %s30, 1
      %s620 = smul.addr %s619, 4
      %s621 = smul.addr %s620, 4
      %s622 = scalar_lea.vmem %s12, %s621
      %p623 = pneg %p370
      %p624 = pneg %p367
      %p625 = scmp.lt.s32.totalorder %s30, 1
      %s626 = scalar_select %p625, %s30, 1
      %s627 = scalar_lea.vmem %s13, %s626
      %p628 = pneg %p396
      %p629 = pneg %p393
      %p630 = pneg %p422
      %p631 = pneg %p419
      %p632 = scmp.lt.s32.totalorder %s29, 1
      %s633 = scalar_select %p632, %s29, 1
      %s634 = smul.addr %s633, 2
      %s635 = smul.addr %s634, 8
      %s636 = scalar_lea.vmem %s14, %s635
      %p637 = scmp.lt.s32.totalorder %s29, 1
      %s638 = scalar_select %p637, %s29, 1
      %s639 = smul.addr %s638, 2
      %s640 = smul.addr %s639, 8
      %s641 = scalar_lea.vmem %s0, %s640
      %p642 = scmp.lt.s32.totalorder %s30, 1
      %s643 = scalar_select %p642, %s30, 1
      %s644 = scalar_lea.vmem %s1, %s643
      %p645 = scmp.lt.s32.totalorder %s30, 1
      %s646 = scalar_select %p645, %s30, 1
      %s647 = scalar_lea.vmem %s2, %s646
      %p648 = scmp.lt.s32.totalorder %s30, 1
      %s649 = scalar_select %p648, %s30, 1
      %s650 = smul.addr %s649, 4
      %s651 = smul.addr %s650, 4
      %s652 = scalar_lea.vmem %s3, %s651
      %p653 = scmp.lt.s32.totalorder %s30, 1
      %s654 = scalar_select %p653, %s30, 1
      %s655 = smul.addr %s654, 4
      %s656 = smul.addr %s655, 4
      %s657 = scalar_lea.vmem %s4, %s656
      %p658 = scmp.lt.s32.totalorder %s30, 1
      %s659 = scalar_select %p658, %s30, 1
      %s660 = smul.addr %s659, 4
      %s661 = smul.addr %s660, 4
      %s662 = scalar_lea.vmem %s5, %s661
      %p663 = scmp.lt.s32.totalorder %s30, 1
      %s664 = scalar_select %p663, %s30, 1
      %s665 = smul.addr %s664, 8
      %s666 = smul.addr %s665, 4
      %s667 = scalar_lea.vmem %s6, %s666
      %p668 = scmp.lt.s32.totalorder %s30, 1
      %s669 = scalar_select %p668, %s30, 1
      %s670 = scalar_lea.vmem %s7, %s669
      %p671 = scmp.lt.s32.totalorder %s30, 1
      %s672 = scalar_select %p671, %s30, 1
      %s673 = scalar_lea.vmem %s8, %s672
      %p674 = scmp.lt.s32.totalorder %s30, 1
      %s675 = scalar_select %p674, %s30, 1
      %s676 = scalar_lea.vmem %s9, %s675
      %p677 = scmp.lt.s32.totalorder %s30, 1
      %s678 = scalar_select %p677, %s30, 1
      %s679 = smul.addr %s678, 4
      %s680 = smul.addr %s679, 4
      %s681 = scalar_lea.vmem %s10, %s680
      %p682 = scmp.lt.s32.totalorder %s30, 1
      %s683 = scalar_select %p682, %s30, 1
      %s684 = scalar_lea.vmem %s11, %s683
      %p685 = scmp.lt.s32.totalorder %s30, 1
      %s686 = scalar_select %p685, %s30, 1
      %s687 = smul.addr %s686, 4
      %s688 = smul.addr %s687, 4
      %s689 = scalar_lea.vmem %s12, %s688
      %p690 = scmp.lt.s32.totalorder %s30, 1
      %s691 = scalar_select %p690, %s30, 1
      %s692 = scalar_lea.vmem %s13, %s691
      %p693 = scmp.lt.s32.totalorder %s29, 1
      %s694 = scalar_select %p693, %s29, 1
      %s695 = smul.addr %s694, 2
      %s696 = smul.addr %s695, 8
      %s697 = scalar_lea.vmem %s14, %s696
      %p699 = scmp.eq.s32.totalorder %s30, 0
      // Predicated region
      $region77: #{spectralformer_forward.1} parent=75 // pred_check
        %p700 = pneg %p699
      $region78: #{spectralformer_forward.1} parent=75 // pred_check_branch
        %702 = sbr.rel (%p700) target = $region80
      $region79: #{spectralformer_forward.1} parent=75 // pred_region
        %v703 = vld [vmem:[%s641] sm:$0xff]
        %v704 = vld [vmem:[%s641 + $0x8] sm:$0x1]
        %vm705 = vcmask 261120
        %706 = vst.msk [vmem:[%s697] sm:$0xff] %vm705, %v703
        %vm707 = vcmask 253952
        %708 = vst.msk [vmem:[%s697 + $0x8] sm:$0x1] %vm707, %v704
      $region80: #{spectralformer_forward.1} parent=75 // pred_fallthru
        _
      %v709 = vld [vmem:[%s697] sm:$0xff]
      %v710 = vld [vmem:[%s697 + $0x8] sm:$0x1]
      %v711 = vld [vmem:[%s644] sm:$0x1]
      %v712 = vld [vmem:[%s647] sm:$0x1]
      %vm713 = vcmask 261120
      %v714 = vsel %vm713, %v709, 0.0
      %715 = vadd.xlane.f32.xlu0 %v714
      %v716 = vpop.xlane.xlu0 %715
      %vm717 = vcmask 253952
      %v718 = vsel %vm717, %v710, 0.0
      %719 = vadd.xlane.f32.xlu0 %v718
      %v720 = vpop.xlane.xlu0 %719
      %v721 = vrcp.pop 32.0
      %v722 = vmul.f32 32.0, %v721
      %v723 = vsub.f32 1.0, %v722
      %v724 = vmul.f32 %v721, %v723
      %v725 = vadd.f32 %v721, %v724
      %vm726 = vweird.f32 %v721
      %v727 = vsel %vm726, %v721, %v725
      %v728 = vmul.f32 %v716, %v727
      %v729 = vmul.f32 %v720, %v727
      %v730 = vsub.f32 %v709, %v728
      %v731 = vsub.f32 %v710, %v729
      %v732 = vmul.f32 %v730, %v730
      %v733 = vmul.f32 %v731, %v731
      %v734 = vsel %vm713, %v732, 0.0
      %735 = vadd.xlane.f32.xlu0 %v734
      %v736 = vpop.xlane.xlu0 %735
      %v737 = vsel %vm717, %v733, 0.0
      %738 = vadd.xlane.f32.xlu0 %v737
      %v739 = vpop.xlane.xlu0 %738
      %v740 = vmul.f32 %v736, %v727
      %v741 = vmul.f32 %v739, %v727
      %v742 = vadd.f32 %v740, 1e-05
      %v743 = vadd.f32 %v741, 1e-05
      %v744 = vrsqrt.pop %v742
      %v745 = vmul.f32 %v744, %v742
      %v746 = vmul.f32 %v745, %v744
      %v747 = vmul.f32 0.5, %v746
      %v748 = vsub.f32 1.5, %v747
      %v749 = vmul.f32 %v744, %v748
      %vm750 = vweird.f32 %v742
      %vm751 = vweird.f32 %v744
      %vm752 = vmor %vm750, %vm751
      %v753 = vsel %vm752, %v744, %v749
      %v754 = vrsqrt.pop %v743
      %v755 = vmul.f32 %v754, %v743
      %v756 = vmul.f32 %v755, %v754
      %v757 = vmul.f32 0.5, %v756
      %v758 = vsub.f32 1.5, %v757
      %v759 = vmul.f32 %v754, %v758
      %vm760 = vweird.f32 %v743
      %vm761 = vweird.f32 %v754
      %vm762 = vmor %vm760, %vm761
      %v763 = vsel %vm762, %v754, %v759
      %v764 = vmul.f32 %v730, %v753
      %v765 = vmul.f32 %v731, %v763
      %v767 = vperm.slane %v711, 0
      %v769 = vmul.f32 %v764, %v767
      %v770 = vmul.f32 %v765, %v767
      %v772 = vperm.slane %v712, 0
      %v774 = vadd.f32 %v769, %v772
      %v775 = vadd.f32 %v770, %v772
      %v776 = vpack.c.bf16 %v775, %v774
      %v777 = vld [vmem:[%s652] sm:$0xf]
      %v778 = vld [vmem:[%s652 + $0x4] sm:$0xf]
      %v779 = vld [vmem:[%s652 + $0x8] sm:$0xf]
      %v780 = vld [vmem:[%s652 + $0xc] sm:$0xf]
      %v785 = vunpack.c.l.b16 %v777
      %v786 = vunpack.c.l.b16 %v778
      %v787 = vunpack.c.l.b16 %v779
      %v788 = vunpack.c.l.b16 %v780
      %v789 = vpack.c.b16 %v786, %v785
      %v790 = vpack.c.b16 %v788, %v787
      %v794 = vsel %vm713, %v776, 0
      %796 = vmatpush.bf16.msra.mxu0 0
      %797 = vmatpush.bf16.msra.mxu0 0
      %798 = vmatpush.bf16.msra.mxu0 0
      %799 = vmatpush.bf16.msra.mxu0 0
      %800 = vmatpush.bf16.msra.mxu0 0
      %801 = vmatpush.bf16.msra.mxu0 0
      %802 = vmatpush.bf16.msra.mxu0 %v790
      %803 = vmatpush.bf16.msra.mxu0 %v789
      %804 = vmatmul.bf16.gmra.mxu0 %v794
      %v805 = vpop.f32.mrf.mxu0
      %v806 = vadd.f32 0.0, %v805
      %v807 = vpop.f32.mrf.mxu0
      %v808 = vadd.f32 0.0, %v807
      %809 = vdwg.mxu0
      %v810 = vld [vmem:[%s657] sm:$0xf]
      %v811 = vld [vmem:[%s657 + $0x4] sm:$0xf]
      %v812 = vld [vmem:[%s657 + $0x8] sm:$0xf]
      %v813 = vld [vmem:[%s657 + $0xc] sm:$0xf]
      %v818 = vunpack.c.l.b16 %v810
      %v819 = vunpack.c.l.b16 %v811
      %v820 = vunpack.c.l.b16 %v812
      %v821 = vunpack.c.l.b16 %v813
      %v822 = vpack.c.b16 %v819, %v818
      %v823 = vpack.c.b16 %v821, %v820
      %826 = vmatpush.bf16.msra.mxu0 0
      %827 = vmatpush.bf16.msra.mxu0 0
      %828 = vmatpush.bf16.msra.mxu0 0
      %829 = vmatpush.bf16.msra.mxu0 0
      %830 = vmatpush.bf16.msra.mxu0 0
      %831 = vmatpush.bf16.msra.mxu0 0
      %832 = vmatpush.bf16.msra.mxu0 %v823
      %833 = vmatpush.bf16.msra.mxu0 %v822
      %834 = vmatmul.bf16.gmra.mxu0 %v794
      %v835 = vpop.f32.mrf.mxu0
      %v836 = vadd.f32 0.0, %v835
      %v837 = vpop.f32.mrf.mxu0
      %v838 = vadd.f32 0.0, %v837
      %839 = vdwg.mxu0
      %v840 = vld [vmem:[%s662] sm:$0xf]
      %v841 = vld [vmem:[%s662 + $0x4] sm:$0xf]
      %v842 = vld [vmem:[%s662 + $0x8] sm:$0xf]
      %v843 = vld [vmem:[%s662 + $0xc] sm:$0xf]
      %v848 = vunpack.c.l.b16 %v840
      %v849 = vunpack.c.l.b16 %v841
      %v850 = vunpack.c.l.b16 %v842
      %v851 = vunpack.c.l.b16 %v843
      %v852 = vpack.c.b16 %v849, %v848
      %v853 = vpack.c.b16 %v851, %v850
      %856 = vmatpush.bf16.msra.mxu0 0
      %857 = vmatpush.bf16.msra.mxu0 0
      %858 = vmatpush.bf16.msra.mxu0 0
      %859 = vmatpush.bf16.msra.mxu0 0
      %860 = vmatpush.bf16.msra.mxu0 0
      %861 = vmatpush.bf16.msra.mxu0 0
      %862 = vmatpush.bf16.msra.mxu0 %v853
      %863 = vmatpush.bf16.msra.mxu0 %v852
      %864 = vmatmul.bf16.gmra.mxu0 %v794
      %v865 = vpop.f32.mrf.mxu0
      %v866 = vadd.f32 0.0, %v865
      %v867 = vpop.f32.mrf.mxu0
      %v868 = vadd.f32 0.0, %v867
      %869 = vdwg.mxu0
      %v870 = vpack.c.bf16 %v806, %v806
      %v871 = vpack.c.bf16 %v808, %v808
      %v872 = vpack.c.bf16 %v836, %v836
      %v873 = vpack.c.bf16 %v838, %v838
      %v874 = vpack.c.bf16 %v866, %v866
      %v875 = vpack.c.bf16 %v868, %v868
      %v876 = vld [vmem:[%s667] sm:$0xf]
      %v877 = vld [vmem:[%s667 + $0x4] sm:$0xf]
      %v878 = vld [vmem:[%s667 + $0x8] sm:$0xf]
      %v879 = vld [vmem:[%s667 + $0xc] sm:$0xf]
      %v880 = vld [vmem:[%s667 + $0x10] sm:$0xf]
      %v881 = vld [vmem:[%s667 + $0x14] sm:$0xf]
      %v882 = vld [vmem:[%s667 + $0x18] sm:$0xf]
      %v883 = vld [vmem:[%s667 + $0x1c] sm:$0xf]
      %v886 = vunpack.c.l.b16 %v870
      %v887 = vunpack.c.l.b16 %v871
      %v888 = vpack.c.b16 %v887, %v886
      %v891 = vunpack.c.l.b16 %v872
      %v892 = vunpack.c.l.b16 %v873
      %v893 = vpack.c.b16 %v892, %v891
      %vm894 = vcmask 130048
      %v896 = vsel %vm894, %v888, 0
      %v899 = vsel %vm894, %v893, 0
      %901 = vmatpush.bf16.xpose.msra.mxu0 0
      %902 = vmatpush.bf16.xpose.msra.mxu0 0
      %903 = vmatpush.bf16.xpose.msra.mxu0 0
      %904 = vmatpush.bf16.xpose.msra.mxu0 0
      %905 = vmatpush.bf16.xpose.msra.mxu0 0
      %906 = vmatpush.bf16.xpose.msra.mxu0 0
      %907 = vmatpush.bf16.xpose.msra.mxu0 0
      %908 = vmatpush.bf16.xpose.msra.mxu0 %v899
      %909 = vmatmul.bf16.gmra.mxu0 %v896
      %v910 = vpop.f32.mrf.mxu0
      %v911 = vadd.f32 0.0, %v910
      %v912 = vpop.f32.mrf.mxu0
      %v913 = vadd.f32 0.0, %v912
      %914 = vdwg.mxu0
      %vm915 = vcmask 72704
      %v916 = vsel %vm915, %v911, -inf
      %917 = vmax.xlane.f32.xlu0 %v916
      %v918 = vpop.xlane.xlu0 %917
      %vm919 = vcmask 65536
      %v920 = vsel %vm919, %v913, -inf
      %921 = vmax.xlane.f32.xlu0 %v920
      %v922 = vpop.xlane.xlu0 %921
      %v923 = vsub.f32 %v911, %v918
      %v924 = vsub.f32 %v913, %v922
      %v925 = vmul.f32 %v923, 1.442695
      %v926 = vpow.pop %v925
      %v927 = vmul.f32 %v924, 1.442695
      %v928 = vpow.pop %v927
      %v929 = vsel %vm915, %v926, 0.0
      %930 = vadd.xlane.f32.xlu0 %v929
      %v931 = vpop.xlane.xlu0 %930
      %v932 = vsel %vm919, %v928, 0.0
      %933 = vadd.xlane.f32.xlu0 %v932
      %v934 = vpop.xlane.xlu0 %933
      %v935 = vrcp.pop %v931
      %v936 = vrcp.pop %v934
      %v937 = vmul.f32 %v926, %v935
      %v938 = vmul.f32 %v928, %v936
      %v939 = vpack.c.bf16 %v938, %v937
      %v942 = vunpack.c.l.b16 %v874
      %v943 = vunpack.c.l.b16 %v875
      %v944 = vpack.c.b16 %v943, %v942
      %v946 = vsel %vm915, %v939, 0
      %vm948 = vcmask 1043456
      %vm949 = vcmask 1044480
      %v950 = vsel %vm948, 4294967295, 65535
      %v951 = vsel %vm949, %v950, 0
      %v953 = vand.u32 %v944, %v951
      %955 = vmatpush.bf16.msra.mxu0 0
      %956 = vmatpush.bf16.msra.mxu0 0
      %957 = vmatpush.bf16.msra.mxu0 0
      %958 = vmatpush.bf16.msra.mxu0 0
      %959 = vmatpush.bf16.msra.mxu0 0
      %960 = vmatpush.bf16.msra.mxu0 0
      %961 = vmatpush.bf16.msra.mxu0 0
      %962 = vmatpush.bf16.msra.mxu0 %v953
      %963 = vmatmul.bf16.gmra.mxu0 %v946
      %v964 = vpop.f32.mrf.mxu0
      %v965 = vadd.f32 0.0, %v964
      %v966 = vpop.f32.mrf.mxu0
      %v967 = vadd.f32 0.0, %v966
      %968 = vdwg.mxu0
      %v969 = vpack.c.bf16 %v967, %v965
      %970 = vrot.lane.b32.xlu0 %v888, 112
      %v971 = vpop.permute.xlu0 %970
      %972 = vrot.lane.b32.xlu0 %v893, 112
      %v973 = vpop.permute.xlu0 %972
      %v975 = vsel %vm894, %v971, 0
      %v978 = vsel %vm894, %v973, 0
      %980 = vmatpush.bf16.xpose.msra.mxu0 0
      %981 = vmatpush.bf16.xpose.msra.mxu0 0
      %982 = vmatpush.bf16.xpose.msra.mxu0 0
      %983 = vmatpush.bf16.xpose.msra.mxu0 0
      %984 = vmatpush.bf16.xpose.msra.mxu0 0
      %985 = vmatpush.bf16.xpose.msra.mxu0 0
      %986 = vmatpush.bf16.xpose.msra.mxu0 0
      %987 = vmatpush.bf16.xpose.msra.mxu0 %v978
      %988 = vmatmul.bf16.gmra.mxu0 %v975
      %v989 = vpop.f32.mrf.mxu0
      %v990 = vadd.f32 0.0, %v989
      %v991 = vpop.f32.mrf.mxu0
      %v992 = vadd.f32 0.0, %v991
      %993 = vdwg.mxu0
      %v994 = vsel %vm915, %v990, -inf
      %995 = vmax.xlane.f32.xlu0 %v994
      %v996 = vpop.xlane.xlu0 %995
      %v997 = vsel %vm919, %v992, -inf
      %998 = vmax.xlane.f32.xlu0 %v997
      %v999 = vpop.xlane.xlu0 %998
      %v1000 = vsub.f32 %v990, %v996
      %v1001 = vsub.f32 %v992, %v999
      %v1002 = vmul.f32 %v1000, 1.442695
      %v1003 = vpow.pop %v1002
      %v1004 = vmul.f32 %v1001, 1.442695
      %v1005 = vpow.pop %v1004
      %v1006 = vsel %vm915, %v1003, 0.0
      %1007 = vadd.xlane.f32.xlu0 %v1006
      %v1008 = vpop.xlane.xlu0 %1007
      %v1009 = vsel %vm919, %v1005, 0.0
      %1010 = vadd.xlane.f32.xlu0 %v1009
      %v1011 = vpop.xlane.xlu0 %1010
      %v1012 = vrcp.pop %v1008
      %v1013 = vrcp.pop %v1011
      %v1014 = vmul.f32 %v1003, %v1012
      %v1015 = vmul.f32 %v1005, %v1013
      %v1016 = vpack.c.bf16 %v1015, %v1014
      %1017 = vrot.lane.b32.xlu0 %v944, 112
      %v1018 = vpop.permute.xlu0 %1017
      %v1020 = vsel %vm915, %v1016, 0
      %v1023 = vand.u32 %v1018, %v951
      %1025 = vmatpush.bf16.msra.mxu0 0
      %1026 = vmatpush.bf16.msra.mxu0 0
      %1027 = vmatpush.bf16.msra.mxu0 0
      %1028 = vmatpush.bf16.msra.mxu0 0
      %1029 = vmatpush.bf16.msra.mxu0 0
      %1030 = vmatpush.bf16.msra.mxu0 0
      %1031 = vmatpush.bf16.msra.mxu0 0
      %1032 = vmatpush.bf16.msra.mxu0 %v1023
      %1033 = vmatmul.bf16.gmra.mxu0 %v1020
      %v1034 = vpop.f32.mrf.mxu0
      %v1035 = vadd.f32 0.0, %v1034
      %v1036 = vpop.f32.mrf.mxu0
      %v1037 = vadd.f32 0.0, %v1036
      %1038 = vdwg.mxu0
      %v1039 = vpack.c.bf16 %v1037, %v1035
      %v1042 = vunpack.c.l.b16 %v878
      %v1043 = vunpack.c.l.b16 %v879
      %v1044 = vpack.c.b16 %v1043, %v1042
      %v1047 = vsel %vm894, %v1039, 0
      %1049 = vmatpush.bf16.msra.mxu0 0
      %1050 = vmatpush.bf16.msra.mxu0 0
      %1051 = vmatpush.bf16.msra.mxu0 0
      %1052 = vmatpush.bf16.msra.mxu0 0
      %1053 = vmatpush.bf16.msra.mxu0 0
      %1054 = vmatpush.bf16.msra.mxu0 0
      %1055 = vmatpush.bf16.msra.mxu0 0
      %1056 = vmatpush.bf16.msra.mxu0 %v1044
      %1057 = vmatmul.bf16.gmra.mxu0 %v1047
      %v1058 = vpop.f32.mrf.mxu0
      %v1059 = vadd.f32 0.0, %v1058
      %v1060 = vpop.f32.mrf.mxu0
      %v1061 = vadd.f32 0.0, %v1060
      %1062 = vdwg.mxu0
      %v1065 = vunpack.c.l.b16 %v876
      %v1066 = vunpack.c.l.b16 %v877
      %v1067 = vpack.c.b16 %v1066, %v1065
      %v1070 = vsel %vm894, %v969, 0
      %1072 = vmatpush.bf16.msra.mxu0 0
      %1073 = vmatpush.bf16.msra.mxu0 0
      %1074 = vmatpush.bf16.msra.mxu0 0
      %1075 = vmatpush.bf16.msra.mxu0 0
      %1076 = vmatpush.bf16.msra.mxu0 0
      %1077 = vmatpush.bf16.msra.mxu0 0
      %1078 = vmatpush.bf16.msra.mxu0 0
      %1079 = vmatpush.bf16.msra.mxu0 %v1067
      %1080 = vmatmul.bf16.gmra.mxu0 %v1070
      %v1081 = vpop.f32.mrf.mxu0
      %v1082 = vadd.f32 %v1059, %v1081
      %v1083 = vpop.f32.mrf.mxu0
      %v1084 = vadd.f32 %v1061, %v1083
      %1085 = vdwg.mxu0
      %1086 = vrot.lane.b32.xlu0 %v888, 96
      %v1087 = vpop.permute.xlu0 %1086
      %1088 = vrot.lane.b32.xlu0 %v893, 96
      %v1089 = vpop.permute.xlu0 %1088
      %v1091 = vsel %vm894, %v1087, 0
      %v1094 = vsel %vm894, %v1089, 0
      %1096 = vmatpush.bf16.xpose.msra.mxu0 0
      %1097 = vmatpush.bf16.xpose.msra.mxu0 0
      %1098 = vmatpush.bf16.xpose.msra.mxu0 0
      %1099 = vmatpush.bf16.xpose.msra.mxu0 0
      %1100 = vmatpush.bf16.xpose.msra.mxu0 0
      %1101 = vmatpush.bf16.xpose.msra.mxu0 0
      %1102 = vmatpush.bf16.xpose.msra.mxu0 0
      %1103 = vmatpush.bf16.xpose.msra.mxu0 %v1094
      %1104 = vmatmul.bf16.gmra.mxu0 %v1091
      %v1105 = vpop.f32.mrf.mxu0
      %v1106 = vadd.f32 0.0, %v1105
      %v1107 = vpop.f32.mrf.mxu0
      %v1108 = vadd.f32 0.0, %v1107
      %1109 = vdwg.mxu0
      %v1110 = vsel %vm915, %v1106, -inf
      %1111 = vmax.xlane.f32.xlu0 %v1110
      %v1112 = vpop.xlane.xlu0 %1111
      %v1113 = vsel %vm919, %v1108, -inf
      %1114 = vmax.xlane.f32.xlu0 %v1113
      %v1115 = vpop.xlane.xlu0 %1114
      %v1116 = vsub.f32 %v1106, %v1112
      %v1117 = vsub.f32 %v1108, %v1115
      %v1118 = vmul.f32 %v1116, 1.442695
      %v1119 = vpow.pop %v1118
      %v1120 = vmul.f32 %v1117, 1.442695
      %v1121 = vpow.pop %v1120
      %v1122 = vsel %vm915, %v1119, 0.0
      %1123 = vadd.xlane.f32.xlu0 %v1122
      %v1124 = vpop.xlane.xlu0 %1123
      %v1125 = vsel %vm919, %v1121, 0.0
      %1126 = vadd.xlane.f32.xlu0 %v1125
      %v1127 = vpop.xlane.xlu0 %1126
      %v1128 = vrcp.pop %v1124
      %v1129 = vrcp.pop %v1127
      %v1130 = vmul.f32 %v1119, %v1128
      %v1131 = vmul.f32 %v1121, %v1129
      %v1132 = vpack.c.bf16 %v1131, %v1130
      %1133 = vrot.lane.b32.xlu0 %v944, 96
      %v1134 = vpop.permute.xlu0 %1133
      %v1136 = vsel %vm915, %v1132, 0
      %v1139 = vand.u32 %v1134, %v951
      %1141 = vmatpush.bf16.msra.mxu0 0
      %1142 = vmatpush.bf16.msra.mxu0 0
      %1143 = vmatpush.bf16.msra.mxu0 0
      %1144 = vmatpush.bf16.msra.mxu0 0
      %1145 = vmatpush.bf16.msra.mxu0 0
      %1146 = vmatpush.bf16.msra.mxu0 0
      %1147 = vmatpush.bf16.msra.mxu0 0
      %1148 = vmatpush.bf16.msra.mxu0 %v1139
      %1149 = vmatmul.bf16.gmra.mxu0 %v1136
      %v1150 = vpop.f32.mrf.mxu0
      %v1151 = vadd.f32 0.0, %v1150
      %v1152 = vpop.f32.mrf.mxu0
      %v1153 = vadd.f32 0.0, %v1152
      %1154 = vdwg.mxu0
      %v1155 = vpack.c.bf16 %v1153, %v1151
      %v1158 = vunpack.c.l.b16 %v880
      %v1159 = vunpack.c.l.b16 %v881
      %v1160 = vpack.c.b16 %v1159, %v1158
      %v1163 = vsel %vm894, %v1155, 0
      %1165 = vmatpush.bf16.msra.mxu0 0
      %1166 = vmatpush.bf16.msra.mxu0 0
      %1167 = vmatpush.bf16.msra.mxu0 0
      %1168 = vmatpush.bf16.msra.mxu0 0
      %1169 = vmatpush.bf16.msra.mxu0 0
      %1170 = vmatpush.bf16.msra.mxu0 0
      %1171 = vmatpush.bf16.msra.mxu0 0
      %1172 = vmatpush.bf16.msra.mxu0 %v1160
      %1173 = vmatmul.bf16.gmra.mxu0 %v1163
      %v1174 = vpop.f32.mrf.mxu0
      %v1175 = vadd.f32 0.0, %v1174
      %v1176 = vpop.f32.mrf.mxu0
      %v1177 = vadd.f32 0.0, %v1176
      %1178 = vdwg.mxu0
      %v1179 = vadd.f32 %v1082, %v1175
      %v1180 = vadd.f32 %v1084, %v1177
      %1181 = vrot.lane.b32.xlu0 %v888, 80
      %v1182 = vpop.permute.xlu0 %1181
      %1183 = vrot.lane.b32.xlu0 %v893, 80
      %v1184 = vpop.permute.xlu0 %1183
      %v1186 = vsel %vm894, %v1182, 0
      %v1189 = vsel %vm894, %v1184, 0
      %1191 = vmatpush.bf16.xpose.msra.mxu0 0
      %1192 = vmatpush.bf16.xpose.msra.mxu0 0
      %1193 = vmatpush.bf16.xpose.msra.mxu0 0
      %1194 = vmatpush.bf16.xpose.msra.mxu0 0
      %1195 = vmatpush.bf16.xpose.msra.mxu0 0
      %1196 = vmatpush.bf16.xpose.msra.mxu0 0
      %1197 = vmatpush.bf16.xpose.msra.mxu0 0
      %1198 = vmatpush.bf16.xpose.msra.mxu0 %v1189
      %1199 = vmatmul.bf16.gmra.mxu0 %v1186
      %v1200 = vpop.f32.mrf.mxu0
      %v1201 = vadd.f32 0.0, %v1200
      %v1202 = vpop.f32.mrf.mxu0
      %v1203 = vadd.f32 0.0, %v1202
      %1204 = vdwg.mxu0
      %v1205 = vsel %vm915, %v1201, -inf
      %1206 = vmax.xlane.f32.xlu0 %v1205
      %v1207 = vpop.xlane.xlu0 %1206
      %v1208 = vsel %vm919, %v1203, -inf
      %1209 = vmax.xlane.f32.xlu0 %v1208
      %v1210 = vpop.xlane.xlu0 %1209
      %v1211 = vsub.f32 %v1201, %v1207
      %v1212 = vsub.f32 %v1203, %v1210
      %v1213 = vmul.f32 %v1211, 1.442695
      %v1214 = vpow.pop %v1213
      %v1215 = vmul.f32 %v1212, 1.442695
      %v1216 = vpow.pop %v1215
      %v1217 = vsel %vm915, %v1214, 0.0
      %1218 = vadd.xlane.f32.xlu0 %v1217
      %v1219 = vpop.xlane.xlu0 %1218
      %v1220 = vsel %vm919, %v1216, 0.0
      %1221 = vadd.xlane.f32.xlu0 %v1220
      %v1222 = vpop.xlane.xlu0 %1221
      %v1223 = vrcp.pop %v1219
      %v1224 = vrcp.pop %v1222
      %v1225 = vmul.f32 %v1214, %v1223
      %v1226 = vmul.f32 %v1216, %v1224
      %v1227 = vpack.c.bf16 %v1226, %v1225
      %1228 = vrot.lane.b32.xlu0 %v944, 80
      %v1229 = vpop.permute.xlu0 %1228
      %v1231 = vsel %vm915, %v1227, 0
      %v1234 = vand.u32 %v1229, %v951
      %1236 = vmatpush.bf16.msra.mxu0 0
      %1237 = vmatpush.bf16.msra.mxu0 0
      %1238 = vmatpush.bf16.msra.mxu0 0
      %1239 = vmatpush.bf16.msra.mxu0 0
      %1240 = vmatpush.bf16.msra.mxu0 0
      %1241 = vmatpush.bf16.msra.mxu0 0
      %1242 = vmatpush.bf16.msra.mxu0 0
      %1243 = vmatpush.bf16.msra.mxu0 %v1234
      %1244 = vmatmul.bf16.gmra.mxu0 %v1231
      %v1245 = vpop.f32.mrf.mxu0
      %v1246 = vadd.f32 0.0, %v1245
      %v1247 = vpop.f32.mrf.mxu0
      %v1248 = vadd.f32 0.0, %v1247
      %1249 = vdwg.mxu0
      %v1250 = vpack.c.bf16 %v1248, %v1246
      %v1253 = vunpack.c.l.b16 %v882
      %v1254 = vunpack.c.l.b16 %v883
      %v1255 = vpack.c.b16 %v1254, %v1253
      %v1258 = vsel %vm894, %v1250, 0
      %1260 = vmatpush.bf16.msra.mxu0 0
      %1261 = vmatpush.bf16.msra.mxu0 0
      %1262 = vmatpush.bf16.msra.mxu0 0
      %1263 = vmatpush.bf16.msra.mxu0 0
      %1264 = vmatpush.bf16.msra.mxu0 0
      %1265 = vmatpush.bf16.msra.mxu0 0
      %1266 = vmatpush.bf16.msra.mxu0 0
      %1267 = vmatpush.bf16.msra.mxu0 %v1255
      %1268 = vmatmul.bf16.gmra.mxu0 %v1258
      %v1269 = vpop.f32.mrf.mxu0
      %v1270 = vadd.f32 0.0, %v1269
      %v1271 = vpop.f32.mrf.mxu0
      %v1272 = vadd.f32 0.0, %v1271
      %1273 = vdwg.mxu0
      %v1274 = vadd.f32 %v1179, %v1270
      %v1275 = vadd.f32 %v1180, %v1272
      %v1276 = vadd.f32 %v709, %v1274
      %v1277 = vadd.f32 %v710, %v1275
      %v1278 = vld [vmem:[%s670] sm:$0x1]
      %v1280 = vperm.slane %v1278, 0
      %v1282 = vadd.f32 %v1276, %v1280
      %v1283 = vadd.f32 %v1277, %v1280
      %v1284 = vld [vmem:[%s673] sm:$0x1]
      %v1285 = vld [vmem:[%s676] sm:$0x1]
      %v1286 = vsel %vm713, %v1282, 0.0
      %1287 = vadd.xlane.f32.xlu0 %v1286
      %v1288 = vpop.xlane.xlu0 %1287
      %v1289 = vsel %vm717, %v1283, 0.0
      %1290 = vadd.xlane.f32.xlu0 %v1289
      %v1291 = vpop.xlane.xlu0 %1290
      %v1292 = vmul.f32 %v1288, %v727
      %v1293 = vmul.f32 %v1291, %v727
      %v1294 = vsub.f32 %v1282, %v1292
      %v1295 = vsub.f32 %v1283, %v1293
      %v1296 = vmul.f32 %v1294, %v1294
      %v1297 = vmul.f32 %v1295, %v1295
      %v1298 = vsel %vm713, %v1296, 0.0
      %1299 = vadd.xlane.f32.xlu0 %v1298
      %v1300 = vpop.xlane.xlu0 %1299
      %v1301 = vsel %vm717, %v1297, 0.0
      %1302 = vadd.xlane.f32.xlu0 %v1301
      %v1303 = vpop.xlane.xlu0 %1302
      %v1304 = vmul.f32 %v1300, %v727
      %v1305 = vmul.f32 %v1303, %v727
      %v1306 = vadd.f32 %v1304, 1e-05
      %v1307 = vadd.f32 %v1305, 1e-05
      %v1308 = vrsqrt.pop %v1306
      %v1309 = vmul.f32 %v1308, %v1306
      %v1310 = vmul.f32 %v1309, %v1308
      %v1311 = vmul.f32 0.5, %v1310
      %v1312 = vsub.f32 1.5, %v1311
      %v1313 = vmul.f32 %v1308, %v1312
      %vm1314 = vweird.f32 %v1306
      %vm1315 = vweird.f32 %v1308
      %vm1316 = vmor %vm1314, %vm1315
      %v1317 = vsel %vm1316, %v1308, %v1313
      %v1318 = vrsqrt.pop %v1307
      %v1319 = vmul.f32 %v1318, %v1307
      %v1320 = vmul.f32 %v1319, %v1318
      %v1321 = vmul.f32 0.5, %v1320
      %v1322 = vsub.f32 1.5, %v1321
      %v1323 = vmul.f32 %v1318, %v1322
      %vm1324 = vweird.f32 %v1307
      %vm1325 = vweird.f32 %v1318
      %vm1326 = vmor %vm1324, %vm1325
      %v1327 = vsel %vm1326, %v1318, %v1323
      %v1328 = vmul.f32 %v1294, %v1317
      %v1329 = vmul.f32 %v1295, %v1327
      %v1331 = vperm.slane %v1284, 0
      %v1333 = vmul.f32 %v1328, %v1331
      %v1334 = vmul.f32 %v1329, %v1331
      %v1336 = vperm.slane %v1285, 0
      %v1338 = vadd.f32 %v1333, %v1336
      %v1339 = vadd.f32 %v1334, %v1336
      %v1340 = vpack.c.bf16 %v1339, %v1338
      %v1341 = vld [vmem:[%s681] sm:$0xf]
      %v1342 = vld [vmem:[%s681 + $0x4] sm:$0xf]
      %v1343 = vld [vmem:[%s681 + $0x8] sm:$0xf]
      %v1344 = vld [vmem:[%s681 + $0xc] sm:$0xf]
      %v1345 = vld [vmem:[%s684] sm:$0x1]
      %v1347 = vperm.slane %v1345, 0
      %v1353 = vunpack.c.l.b16 %v1341
      %v1354 = vunpack.c.l.b16 %v1342
      %v1355 = vunpack.c.l.b16 %v1343
      %v1356 = vunpack.c.l.b16 %v1344
      %v1357 = vpack.c.b16 %v1354, %v1353
      %v1358 = vpack.c.b16 %v1356, %v1355
      %v1362 = vsel %vm713, %v1340, 0
      %1364 = vmatpush.bf16.msra.mxu0 0
      %1365 = vmatpush.bf16.msra.mxu0 0
      %1366 = vmatpush.bf16.msra.mxu0 0
      %1367 = vmatpush.bf16.msra.mxu0 0
      %1368 = vmatpush.bf16.msra.mxu0 0
      %1369 = vmatpush.bf16.msra.mxu0 0
      %1370 = vmatpush.bf16.msra.mxu0 %v1358
      %1371 = vmatpush.bf16.msra.mxu0 %v1357
      %1372 = vmatmul.bf16.gmra.mxu0 %v1362
      %v1373 = vpop.f32.mrf.mxu0
      %v1374 = vadd.f32 %v1347, %v1373
      %v1375 = vpop.f32.mrf.mxu0
      %v1376 = vadd.f32 %v1347, %v1375
      %1377 = vdwg.mxu0
      %v1378 = vmul.f32 %v1374, 0.70710677
      %v1379 = vmul.f32 %v1376, 0.70710677
      %v1380 = vand.u32 2147483647, %v1378
      %v1381 = vand.u32 2147483647, %v1379
      %v1382 = vmul.f32 %v1380, 0.3275911
      %v1383 = vmul.f32 %v1381, 0.3275911
      %v1384 = vadd.f32 %v1382, 1.0
      %v1385 = vadd.f32 %v1383, 1.0
      %v1386 = vrcp.pop %v1384
      %v1387 = vmul.f32 %v1384, %v1386
      %v1388 = vsub.f32 1.0, %v1387
      %v1389 = vmul.f32 %v1386, %v1388
      %v1390 = vadd.f32 %v1386, %v1389
      %vm1391 = vweird.f32 %v1384
      %vm1392 = vweird.f32 %v1386
      %vm1393 = vmor %vm1391, %vm1392
      %v1394 = vsel %vm1393, %v1386, %v1390
      %v1395 = vand.u32 2147483647, %v1384
      %vm1396 = vcmp.eq.f32.partialorder %v1395, 8.507059e+37
      %v1397 = vand.u32 %v1384, 2147483648
      %v1398 = vor.u32 1.1754944e-38, %v1397
      %v1399 = vsel %vm1396, %v1398, %v1394
      %v1400 = vmul.f32 1.0, %v1399
      %v1401 = vrcp.pop %v1385
      %v1402 = vmul.f32 %v1385, %v1401
      %v1403 = vsub.f32 1.0, %v1402
      %v1404 = vmul.f32 %v1401, %v1403
      %v1405 = vadd.f32 %v1401, %v1404
      %vm1406 = vweird.f32 %v1385
      %vm1407 = vweird.f32 %v1401
      %vm1408 = vmor %vm1406, %vm1407
      %v1409 = vsel %vm1408, %v1401, %v1405
      %v1410 = vand.u32 2147483647, %v1385
      %vm1411 = vcmp.eq.f32.partialorder %v1410, 8.507059e+37
      %v1412 = vand.u32 %v1385, 2147483648
      %v1413 = vor.u32 1.1754944e-38, %v1412
      %v1414 = vsel %vm1411, %v1413, %v1409
      %v1415 = vmul.f32 1.0, %v1414
      %v1416 = vmul.f32 %v1400, 1.0614054
      %v1417 = vmul.f32 %v1415, 1.0614054
      %v1418 = vadd.f32 %v1416, -1.4531521
      %v1419 = vadd.f32 %v1417, -1.4531521
      %v1420 = vmul.f32 %v1400, %v1418
      %v1421 = vmul.f32 %v1415, %v1419
      %v1422 = vadd.f32 %v1420, 1.4214138
      %v1423 = vadd.f32 %v1421, 1.4214138
      %v1424 = vmul.f32 %v1400, %v1422
      %v1425 = vmul.f32 %v1415, %v1423
      %v1426 = vadd.f32 %v1424, -0.28449672
      %v1427 = vadd.f32 %v1425, -0.28449672
      %v1428 = vmul.f32 %v1400, %v1426
      %v1429 = vmul.f32 %v1415, %v1427
      %v1430 = vadd.f32 %v1428, 0.2548296
      %v1431 = vadd.f32 %v1429, 0.2548296
      %v1432 = vmul.f32 %v1400, %v1430
      %v1433 = vmul.f32 %v1415, %v1431
      %v1434 = vsub.f32 0.0, %v1380
      %v1435 = vsub.f32 0.0, %v1381
      %v1436 = vmul.f32 %v1434, %v1380
      %v1437 = vmul.f32 %v1435, %v1381
      %v1438 = vmul.f32 %v1436, 1.442695
      %v1439 = vpow.pop %v1438
      %v1440 = vmul.f32 %v1437, 1.442695
      %v1441 = vpow.pop %v1440
      %v1442 = vmul.f32 %v1432, %v1439
      %v1443 = vmul.f32 %v1433, %v1441
      %v1444 = vsub.f32 1.0, %v1442
      %v1445 = vsub.f32 1.0, %v1443
      %vm1446 = vcmp.lt.f32.partialorder %v1378, 0.0
      %vm1447 = vcmp.lt.f32.partialorder %v1379, 0.0
      %v1448 = vsub.f32 0.0, %v1444
      %v1449 = vsub.f32 0.0, %v1445
      %v1450 = vsel %vm1446, %v1448, %v1444
      %v1451 = vsel %vm1447, %v1449, %v1445
      %v1452 = vmul.f32 %v1374, 0.5
      %v1453 = vmul.f32 %v1376, 0.5
      %v1454 = vadd.f32 %v1450, 1.0
      %v1455 = vadd.f32 %v1451, 1.0
      %v1456 = vmul.f32 %v1452, %v1454
      %v1457 = vmul.f32 %v1453, %v1455
      %v1458 = vpack.c.bf16 %v1457, %v1456
      %v1459 = vld [vmem:[%s689] sm:$0xf]
      %v1460 = vld [vmem:[%s689 + $0x4] sm:$0xf]
      %v1461 = vld [vmem:[%s689 + $0x8] sm:$0xf]
      %v1462 = vld [vmem:[%s689 + $0xc] sm:$0xf]
      %v1463 = vld [vmem:[%s692] sm:$0x1]
      %v1465 = vperm.slane %v1463, 0
      %v1471 = vunpack.c.l.b16 %v1459
      %v1472 = vunpack.c.l.b16 %v1460
      %v1473 = vunpack.c.l.b16 %v1461
      %v1474 = vunpack.c.l.b16 %v1462
      %v1475 = vpack.c.b16 %v1472, %v1471
      %v1476 = vpack.c.b16 %v1474, %v1473
      %v1480 = vsel %vm713, %v1458, 0
      %1482 = vmatpush.bf16.msra.mxu0 0
      %1483 = vmatpush.bf16.msra.mxu0 0
      %1484 = vmatpush.bf16.msra.mxu0 0
      %1485 = vmatpush.bf16.msra.mxu0 0
      %1486 = vmatpush.bf16.msra.mxu0 0
      %1487 = vmatpush.bf16.msra.mxu0 0
      %1488 = vmatpush.bf16.msra.mxu0 %v1476
      %1489 = vmatpush.bf16.msra.mxu0 %v1475
      %1490 = vmatmul.bf16.gmra.mxu0 %v1480
      %v1491 = vpop.f32.mrf.mxu0
      %v1492 = vadd.f32 %v1465, %v1491
      %v1493 = vpop.f32.mrf.mxu0
      %v1494 = vadd.f32 %v1465, %v1493
      %1495 = vdwg.mxu0
      %v1496 = vadd.f32 %v1282, %v1492
      %v1497 = vadd.f32 %v1283, %v1494
      %1498 = vst.msk [vmem:[%s697] sm:$0xff] %vm713, %v1496
      %1499 = vst.msk [vmem:[%s697 + $0x8] sm:$0x1] %vm717, %v1497
      %p1500 = scmp.lt.s32.totalorder %s29, 1
      %s1501 = scalar_select %p1500, %s29, 1
      %s1502 = smul.addr %s1501, 2
      %s1503 = smul.addr %s1502, 8
      %s1504 = scalar_lea.vmem %s14, %s1503
      // Predicated region
      $region81: #{spectralformer_forward.1} parent=75 // pred_check
        %p1505 = pneg %p419
      $region82: #{spectralformer_forward.1} parent=75 // pred_check_branch
        %1507 = sbr.rel (%p1505) target = $region84
      $region83: #{spectralformer_forward.1} parent=75 // pred_region
        _
      $region84: #{spectralformer_forward.1} parent=75 // pred_fallthru
        _
    $region76: #{spectralformer_forward.1} parent=5 // pred_fallthru
      _
    %p1508 = scmp.le.s32.totalorder 2, %s20
    // Predicated region
    $region85: #{spectralformer_forward.1} parent=5 // pred_check
      %p1509 = pneg %p1508
    $region86: #{spectralformer_forward.1} parent=5 // pred_check_branch
      %1511 = sbr.rel (%p1509) target = $region88
    $region87: #{spectralformer_forward.1} parent=5 // pred_region
      %s1512 = ssub.s32 %s20, 2
      // Predicated region
      $region89: #{spectralformer_forward.1} parent=87 // pred_check
        %p1513 = pneg %p425
      $region90: #{spectralformer_forward.1} parent=87 // pred_check_branch
        %1515 = sbr.rel (%p1513) target = $region92
      $region91: #{spectralformer_forward.1} parent=87 // pred_region
        %p1516 = scmp.lt.s32.totalorder %s31, 1
        %s1517 = scalar_select %p1516, %s31, 1
        %s1518 = smul.addr %s1517, 2
        %s1519 = smul.addr %s1518, 8
        %s1520 = scalar_lea.vmem %s14, %s1519
      $region92: #{spectralformer_forward.1} parent=87 // pred_fallthru
        _
    $region88: #{spectralformer_forward.1} parent=5 // pred_fallthru
      _
  $region6: #{spectralformer_forward.1} parent=0 // loop_footer
    %s24 = sadd.s32 1, %s20
  $region7: #{spectralformer_forward.1} parent=0 // loop_footer_branch
    %19 = sbr.rel target = $region3
  $region8: #{spectralformer_forward.1} parent=0 // loop_exit
    _

</llo_original>
